<compile_context>
chip_gen: v5e
topology: v5e:2x2
jax: 0.10.0
libtpu: 0.0.40
codegen_flags: <defaults>
</compile_context>

<pallas_src>
import functools

import jax
import jax.numpy as jnp
from jax import lax
from jax.experimental import pallas as pl
from jax.experimental.pallas import tpu as pltpu


_SUBLANE = 8       # f32 sublane count
_MAX_B_TILE = 128  # cap batch tile (rows fed to the MXU per recurrent matmul)


def lstm_maxpool_kernel(x_ref, w_ih_ref, w_hh_ref, b_ref, pooled_ref, gx_ref):
    """LSTM recurrence + temporal max-pool for one batch tile.

    x_ref      : (T, Bt, E)   time-major input embeddings (batch tile)
    w_ih_ref   : (E, 4H)      input->gates weights, gate cols ordered (i,f,o,g)
    w_hh_ref   : (H, 4H)      hidden->gates weights, gate cols ordered (i,f,o,g)
    b_ref      : (1, 4H)      bias_ih + bias_hh, gate cols ordered (i,f,o,g)
    pooled_ref : (Bt, H)      max over time of hidden states
    gx_ref     : (T, Bt, 4H)  VMEM scratch for the hoisted input projection
    """
    T, B, E = x_ref.shape
    H = w_hh_ref.shape[0]

    # --- Hoisted input projection: ONE matmul for all timesteps, bias fused.
    x_all = x_ref[...].reshape(T * B, E)
    gx = (jnp.dot(x_all, w_ih_ref[...], preferred_element_type=jnp.float32)
          + b_ref[...])                                        # (T*B, 4H)
    gx_ref[...] = gx.reshape(T, B, 4 * H)

    w_hh = w_hh_ref[...]
    h0 = jnp.zeros((B, H), jnp.float32)
    c0 = jnp.zeros((B, H), jnp.float32)
    m0 = jnp.full((B, H), -jnp.inf, jnp.float32)

    def step(t, carry):
        h, c, m = carry
        gates = gx_ref[t] + jnp.dot(h, w_hh,
                                    preferred_element_type=jnp.float32)  # (B, 4H)
        # Gate columns pre-permuted to (i, f, o, g): one sigmoid, one tanh.
        sig = jax.nn.sigmoid(gates[:, :3 * H])
        i_g = sig[:, 0 * H:1 * H]
        f_g = sig[:, 1 * H:2 * H]
        o_g = sig[:, 2 * H:3 * H]
        g_g = jnp.tanh(gates[:, 3 * H:4 * H])
        c_new = f_g * c + i_g * g_g
        h_new = o_g * jnp.tanh(c_new)
        m_new = jnp.maximum(m, h_new)
        return (h_new, c_new, m_new)

    # Short fixed trip count -> fully unroll (LLO visibility); cap for long T.
    unroll = True if T <= 32 else 8
    _, _, pooled = lax.fori_loop(0, T, step, (h0, c0, m0), unroll=unroll)
    pooled_ref[...] = pooled


def init_params(key, vocab_size, embedding_dim, hidden_dim, output_dim=2):
    ks = jax.random.split(key, 8)
    scale = 0.1
    E, H, O = embedding_dim, hidden_dim, output_dim
    return {
        "buggy_emb": scale * jax.random.normal(ks[0], (vocab_size, E), jnp.float32),
        "patch_emb": scale * jax.random.normal(ks[1], (vocab_size, E), jnp.float32),
        # already transposed vs. PyTorch storage; gate order i,f,g,o preserved
        "w_ih": scale * jax.random.normal(ks[2], (E, 4 * H), jnp.float32),
        "w_hh": scale * jax.random.normal(ks[3], (H, 4 * H), jnp.float32),
        "b_ih": scale * jax.random.normal(ks[4], (4 * H,), jnp.float32),
        "b_hh": scale * jax.random.normal(ks[5], (4 * H,), jnp.float32),
        "w_fc": scale * jax.random.normal(ks[6], (H, O), jnp.float32),
        "b_fc": scale * jax.random.normal(ks[7], (O,), jnp.float32),
    }


def _gate_perm(H):
    """Column permutation (i,f,g,o) -> (i,f,o,g)."""
    return jnp.concatenate([jnp.arange(0, 2 * H),
                            jnp.arange(3 * H, 4 * H),
                            jnp.arange(2 * H, 3 * H)])


def _round_up(n, m):
    return ((n + m - 1) // m) * m


@functools.partial(jax.jit)
def discriminator_forward(buggy_ids, patch_ids, params):
    # ---- glue: embedding lookups + concat (gathers stay in plain JAX) ----
    buggy_emb = jnp.take(params["buggy_emb"], buggy_ids, axis=0)   # (B, Tb, E)
    patch_emb = jnp.take(params["patch_emb"], patch_ids, axis=0)   # (B, Tp, E)
    x = jnp.concatenate([buggy_emb, patch_emb], axis=1)            # (B, T, E)
    x = jnp.transpose(x, (1, 0, 2)).astype(jnp.float32)            # (T, B, E)

    T, B, E = x.shape
    H = params["w_hh"].shape[0]
    assert T >= 1, "max-pool over an empty sequence is undefined"

    # ---- adaptive batch tiling (padded rows discarded after the kernel) ----
    # One tile covers the whole padded batch up to 128 rows (fills MXU rows
    # per recurrent matmul); bigger batches tile at 128 and shard the grid
    # axis across TensorCores.
    b8 = _round_up(B, _SUBLANE)
    if b8 <= _MAX_B_TILE:
        b_tile = b8
        B_pad = b8
    else:
        b_tile = _MAX_B_TILE
        B_pad = _round_up(B, _MAX_B_TILE)
    if B_pad != B:
        x = jnp.pad(x, ((0, 0), (0, B_pad - B), (0, 0)))

    # ---- gate-column reorder (i,f,g,o) -> (i,f,o,g) + fused bias ----
    perm = _gate_perm(H)
    w_ih = params["w_ih"][:, perm]
    w_hh = params["w_hh"][:, perm]
    bias = (params["b_ih"] + params["b_hh"])[perm].reshape(1, 4 * H)

    n_btiles = B_pad // b_tile
    pooled = pl.pallas_call(
        lstm_maxpool_kernel,
        out_shape=jax.ShapeDtypeStruct((B_pad, H), jnp.float32),
        grid=(n_btiles,),
        in_specs=[
            pl.BlockSpec((T, b_tile, E), lambda b: (0, b, 0)),
            pl.BlockSpec((E, 4 * H), lambda b: (0, 0)),
            pl.BlockSpec((H, 4 * H), lambda b: (0, 0)),
            pl.BlockSpec((1, 4 * H), lambda b: (0, 0)),
        ],
        out_specs=pl.BlockSpec((b_tile, H), lambda b: (b, 0)),
        scratch_shapes=[pltpu.VMEM((T, b_tile, 4 * H), jnp.float32)],
        compiler_params=pltpu.CompilerParams(
            dimension_semantics=("parallel",)),
    )(x, w_ih, w_hh, bias)

    # ---- final Linear in the wrapper (lane-sparse (B,2) output kept out of
    #      the kernel); Dropout(p=0.3) is identity at inference time. ----
    pooled = pooled[:B]
    return pooled @ params["w_fc"] + params["b_fc"]


def discriminator_forward_ref(buggy_ids, patch_ids, params):
    """Pure-JAX reference for correctness checking (PyTorch gate order)."""
    buggy_emb = jnp.take(params["buggy_emb"], buggy_ids, axis=0)
    patch_emb = jnp.take(params["patch_emb"], patch_ids, axis=0)
    x = jnp.concatenate([buggy_emb, patch_emb], axis=1)            # (B, T, E)
    B, T, E = x.shape
    H = params["w_hh"].shape[0]
    bias = params["b_ih"] + params["b_hh"]

    def step(carry, x_t):
        h, c = carry
        gates = x_t @ params["w_ih"] + h @ params["w_hh"] + bias
        i_g = jax.nn.sigmoid(gates[:, 0 * H:1 * H])
        f_g = jax.nn.sigmoid(gates[:, 1 * H:2 * H])
        g_g = jnp.tanh(gates[:, 2 * H:3 * H])
        o_g = jax.nn.sigmoid(gates[:, 3 * H:4 * H])
        c = f_g * c + i_g * g_g
        h = o_g * jnp.tanh(c)
        return (h, c), h

    init = (jnp.zeros((B, H)), jnp.zeros((B, H)))
    _, hs = lax.scan(step, init, jnp.transpose(x, (1, 0, 2)))      # (T, B, H)
    pooled = jnp.max(hs, axis=0)                                   # (B, H)
    return pooled @ params["w_fc"] + params["b_fc"]


if __name__ == "__main__":
    vocab_size, embedding_dim, hidden_dim, output_dim = 50, 32, 32, 2
    batch, seq_buggy, seq_patch = 2, 8, 8

    key = jax.random.PRNGKey(0)
    k_params, k_buggy, k_patch = jax.random.split(key, 3)
    params = init_params(k_params, vocab_size, embedding_dim, hidden_dim,
                         output_dim)

    buggy_ids = jax.random.randint(k_buggy, (batch, seq_buggy), 0, vocab_size)
    patch_ids = jax.random.randint(k_patch, (batch, seq_patch), 0, vocab_size)

    out = discriminator_forward(buggy_ids, patch_ids, params)
    out = jax.block_until_ready(out)

    ref = discriminator_forward_ref(buggy_ids, patch_ids, params)
    assert out.shape == (batch, output_dim)
    assert jnp.allclose(out, ref, atol=1e-4, rtol=1e-4), (out, ref)

    print("KERNEL_OK")
</pallas_src>

<mosaic_0001>
module attributes {stable_mosaic.version = 11 : i64} {
  func.func @lstm_maxpool_kernel(%arg0: i32, %arg1: memref<16x8x32xf32, #tpu.memory_space<vmem>>, %arg2: memref<32x128xf32, #tpu.memory_space<vmem>>, %arg3: memref<32x128xf32, #tpu.memory_space<vmem>>, %arg4: memref<1x128xf32, #tpu.memory_space<vmem>>, %arg5: memref<8x32xf32, #tpu.memory_space<vmem>>, %arg6: memref<16x8x128xf32, #tpu.memory_space<vmem>>) attributes {dimension_semantics = [#tpu.dimension_semantics<parallel>], iteration_bounds = array<i64: 1>, scalar_prefetch = 0 : i64, scratch_operands = 1 : i64, tpu.core_type = #tpu.core_type<tc>, window_params = [{transform_indices = @transform_0, window_bounds = array<i64: 16, 8, 32>}, {pipeline_mode = #tpu.pipeline_mode<synchronous>, transform_indices = @transform_1, window_bounds = array<i64: 32, 128>}, {pipeline_mode = #tpu.pipeline_mode<synchronous>, transform_indices = @transform_2, window_bounds = array<i64: 32, 128>}, {pipeline_mode = #tpu.pipeline_mode<synchronous>, transform_indices = @transform_3, window_bounds = array<i64: 1, 128>}, {transform_indices = @transform_4, window_bounds = array<i64: 8, 32>}]} {
    %c0 = arith.constant 0 : index
    %c0_0 = arith.constant 0 : index
    %c0_1 = arith.constant 0 : index
    %0 = vector.load %arg1[%c0, %c0_0, %c0_1] : memref<16x8x32xf32, #tpu.memory_space<vmem>>, vector<16x8x32xf32>
    %1 = vector.shape_cast %0 : vector<16x8x32xf32> to vector<128x32xf32>
    %c0_2 = arith.constant 0 : index
    %c0_3 = arith.constant 0 : index
    %2 = vector.load %arg2[%c0_2, %c0_3] : memref<32x128xf32, #tpu.memory_space<vmem>>, vector<32x128xf32>
    %cst = arith.constant dense<0.000000e+00> : vector<128x128xf32>
    %3 = tpu.matmul %1, %2, %cst {dimension_numbers = #tpu.dot_dimension_numbers<[1], [0], [0], [1], [0, 0, 1, 1], [], []>} : vector<128x32xf32>, vector<32x128xf32>, vector<128x128xf32> -> vector<128x128xf32>
    %c0_4 = arith.constant 0 : index
    %c0_5 = arith.constant 0 : index
    %4 = vector.load %arg4[%c0_4, %c0_5] : memref<1x128xf32, #tpu.memory_space<vmem>>, vector<1x128xf32>
    %5 = vector.broadcast %4 : vector<1x128xf32> to vector<128x128xf32>
    %6 = arith.addf %3, %5 : vector<128x128xf32>
    %7 = vector.shape_cast %6 : vector<128x128xf32> to vector<16x8x128xf32>
    %c0_6 = arith.constant 0 : index
    %c0_7 = arith.constant 0 : index
    %c0_8 = arith.constant 0 : index
    %8 = vector.load %arg6[%c0_6, %c0_7, %c0_8] : memref<16x8x128xf32, #tpu.memory_space<vmem>>, vector<16x8x128xf32>
    tpu.vector_store %arg6[%c0_6, %c0_7, %c0_8], %7 {strides = array<i32>} : memref<16x8x128xf32, #tpu.memory_space<vmem>>, vector<16x8x128xf32>,
    %c0_9 = arith.constant 0 : index
    %c0_10 = arith.constant 0 : index
    %9 = vector.load %arg3[%c0_9, %c0_10] : memref<32x128xf32, #tpu.memory_space<vmem>>, vector<32x128xf32>
    %cst_11 = arith.constant 0.000000e+00 : f32
    %10 = vector.broadcast %cst_11 : f32 to vector<8x32xf32>
    %cst_12 = arith.constant 0.000000e+00 : f32
    %11 = vector.broadcast %cst_12 : f32 to vector<8x32xf32>
    %cst_13 = arith.constant 0xFF800000 : f32
    %12 = vector.broadcast %cst_13 : f32 to vector<8x32xf32>
    %c0_i32 = arith.constant 0 : i32
    %13 = arith.index_cast %c0_i32 : i32 to index
    %c0_14 = arith.constant 0 : index
    %c0_15 = arith.constant 0 : index
    %14 = vector.load %arg6[%13, %c0_14, %c0_15] : memref<16x8x128xf32, #tpu.memory_space<vmem>>, vector<1x8x128xf32>
    %15 = vector.shape_cast %14 : vector<1x8x128xf32> to vector<8x128xf32>
    %cst_16 = arith.constant dense<0.000000e+00> : vector<8x128xf32>
    %16 = tpu.matmul %10, %9, %cst_16 {dimension_numbers = #tpu.dot_dimension_numbers<[1], [0], [0], [1], [0, 0, 1, 1], [], []>} : vector<8x32xf32>, vector<32x128xf32>, vector<8x128xf32> -> vector<8x128xf32>
    %17 = arith.addf %15, %16 : vector<8x128xf32>
    %18 = vector.extract_strided_slice %17 {offsets = [0, 0], sizes = [8, 96], strides = [1, 1]} : vector<8x128xf32> to vector<8x96xf32>
    %19 = arith.negf %18 : vector<8x96xf32>
    %20 = math.exp %19 : vector<8x96xf32>
    %cst_17 = arith.constant 1.000000e+00 : f32
    %21 = vector.broadcast %cst_17 : f32 to vector<8x96xf32>
    %22 = arith.addf %21, %20 : vector<8x96xf32>
    %23 = arith.divf %21, %22 : vector<8x96xf32>
    %24 = vector.extract_strided_slice %23 {offsets = [0, 0], sizes = [8, 32], strides = [1, 1]} : vector<8x96xf32> to vector<8x32xf32>
    %25 = vector.extract_strided_slice %23 {offsets = [0, 32], sizes = [8, 32], strides = [1, 1]} : vector<8x96xf32> to vector<8x32xf32>
    %26 = vector.extract_strided_slice %23 {offsets = [0, 64], sizes = [8, 32], strides = [1, 1]} : vector<8x96xf32> to vector<8x32xf32>
    %27 = vector.extract_strided_slice %17 {offsets = [0, 96], sizes = [8, 32], strides = [1, 1]} : vector<8x128xf32> to vector<8x32xf32>
    %28 = math.tanh %27 : vector<8x32xf32>
    %29 = arith.mulf %25, %11 : vector<8x32xf32>
    %30 = arith.mulf %24, %28 : vector<8x32xf32>
    %31 = arith.addf %29, %30 : vector<8x32xf32>
    %32 = math.tanh %31 : vector<8x32xf32>
    %33 = arith.mulf %26, %32 : vector<8x32xf32>
    %34 = arith.maximumf %12, %33 : vector<8x32xf32>
    %c1_i32 = arith.constant 1 : i32
    %35 = arith.index_cast %c1_i32 : i32 to index
    %c0_18 = arith.constant 0 : index
    %c0_19 = arith.constant 0 : index
    %36 = vector.load %arg6[%35, %c0_18, %c0_19] : memref<16x8x128xf32, #tpu.memory_space<vmem>>, vector<1x8x128xf32>
    %37 = vector.shape_cast %36 : vector<1x8x128xf32> to vector<8x128xf32>
    %cst_20 = arith.constant dense<0.000000e+00> : vector<8x128xf32>
    %38 = tpu.matmul %33, %9, %cst_20 {dimension_numbers = #tpu.dot_dimension_numbers<[1], [0], [0], [1], [0, 0, 1, 1], [], []>} : vector<8x32xf32>, vector<32x128xf32>, vector<8x128xf32> -> vector<8x128xf32>
    %39 = arith.addf %37, %38 : vector<8x128xf32>
    %40 = vector.extract_strided_slice %39 {offsets = [0, 0], sizes = [8, 96], strides = [1, 1]} : vector<8x128xf32> to vector<8x96xf32>
    %41 = arith.negf %40 : vector<8x96xf32>
    %42 = math.exp %41 : vector<8x96xf32>
    %cst_21 = arith.constant 1.000000e+00 : f32
    %43 = vector.broadcast %cst_21 : f32 to vector<8x96xf32>
    %44 = arith.addf %43, %42 : vector<8x96xf32>
    %45 = arith.divf %43, %44 : vector<8x96xf32>
    %46 = vector.extract_strided_slice %45 {offsets = [0, 0], sizes = [8, 32], strides = [1, 1]} : vector<8x96xf32> to vector<8x32xf32>
    %47 = vector.extract_strided_slice %45 {offsets = [0, 32], sizes = [8, 32], strides = [1, 1]} : vector<8x96xf32> to vector<8x32xf32>
    %48 = vector.extract_strided_slice %45 {offsets = [0, 64], sizes = [8, 32], strides = [1, 1]} : vector<8x96xf32> to vector<8x32xf32>
    %49 = vector.extract_strided_slice %39 {offsets = [0, 96], sizes = [8, 32], strides = [1, 1]} : vector<8x128xf32> to vector<8x32xf32>
    %50 = math.tanh %49 : vector<8x32xf32>
    %51 = arith.mulf %47, %31 : vector<8x32xf32>
    %52 = arith.mulf %46, %50 : vector<8x32xf32>
    %53 = arith.addf %51, %52 : vector<8x32xf32>
    %54 = math.tanh %53 : vector<8x32xf32>
    %55 = arith.mulf %48, %54 : vector<8x32xf32>
    %56 = arith.maximumf %34, %55 : vector<8x32xf32>
    %c2_i32 = arith.constant 2 : i32
    %57 = arith.index_cast %c2_i32 : i32 to index
    %c0_22 = arith.constant 0 : index
    %c0_23 = arith.constant 0 : index
    %58 = vector.load %arg6[%57, %c0_22, %c0_23] : memref<16x8x128xf32, #tpu.memory_space<vmem>>, vector<1x8x128xf32>
    %59 = vector.shape_cast %58 : vector<1x8x128xf32> to vector<8x128xf32>
    %cst_24 = arith.constant dense<0.000000e+00> : vector<8x128xf32>
    %60 = tpu.matmul %55, %9, %cst_24 {dimension_numbers = #tpu.dot_dimension_numbers<[1], [0], [0], [1], [0, 0, 1, 1], [], []>} : vector<8x32xf32>, vector<32x128xf32>, vector<8x128xf32> -> vector<8x128xf32>
    %61 = arith.addf %59, %60 : vector<8x128xf32>
    %62 = vector.extract_strided_slice %61 {offsets = [0, 0], sizes = [8, 96], strides = [1, 1]} : vector<8x128xf32> to vector<8x96xf32>
    %63 = arith.negf %62 : vector<8x96xf32>
    %64 = math.exp %63 : vector<8x96xf32>
    %cst_25 = arith.constant 1.000000e+00 : f32
    %65 = vector.broadcast %cst_25 : f32 to vector<8x96xf32>
    %66 = arith.addf %65, %64 : vector<8x96xf32>
    %67 = arith.divf %65, %66 : vector<8x96xf32>
    %68 = vector.extract_strided_slice %67 {offsets = [0, 0], sizes = [8, 32], strides = [1, 1]} : vector<8x96xf32> to vector<8x32xf32>
    %69 = vector.extract_strided_slice %67 {offsets = [0, 32], sizes = [8, 32], strides = [1, 1]} : vector<8x96xf32> to vector<8x32xf32>
    %70 = vector.extract_strided_slice %67 {offsets = [0, 64], sizes = [8, 32], strides = [1, 1]} : vector<8x96xf32> to vector<8x32xf32>
    %71 = vector.extract_strided_slice %61 {offsets = [0, 96], sizes = [8, 32], strides = [1, 1]} : vector<8x128xf32> to vector<8x32xf32>
    %72 = math.tanh %71 : vector<8x32xf32>
    %73 = arith.mulf %69, %53 : vector<8x32xf32>
    %74 = arith.mulf %68, %72 : vector<8x32xf32>
    %75 = arith.addf %73, %74 : vector<8x32xf32>
    %76 = math.tanh %75 : vector<8x32xf32>
    %77 = arith.mulf %70, %76 : vector<8x32xf32>
    %78 = arith.maximumf %56, %77 : vector<8x32xf32>
    %c3_i32 = arith.constant 3 : i32
    %79 = arith.index_cast %c3_i32 : i32 to index
    %c0_26 = arith.constant 0 : index
    %c0_27 = arith.constant 0 : index
    %80 = vector.load %arg6[%79, %c0_26, %c0_27] : memref<16x8x128xf32, #tpu.memory_space<vmem>>, vector<1x8x128xf32>
    %81 = vector.shape_cast %80 : vector<1x8x128xf32> to vector<8x128xf32>
    %cst_28 = arith.constant dense<0.000000e+00> : vector<8x128xf32>
    %82 = tpu.matmul %77, %9, %cst_28 {dimension_numbers = #tpu.dot_dimension_numbers<[1], [0], [0], [1], [0, 0, 1, 1], [], []>} : vector<8x32xf32>, vector<32x128xf32>, vector<8x128xf32> -> vector<8x128xf32>
    %83 = arith.addf %81, %82 : vector<8x128xf32>
    %84 = vector.extract_strided_slice %83 {offsets = [0, 0], sizes = [8, 96], strides = [1, 1]} : vector<8x128xf32> to vector<8x96xf32>
    %85 = arith.negf %84 : vector<8x96xf32>
    %86 = math.exp %85 : vector<8x96xf32>
    %cst_29 = arith.constant 1.000000e+00 : f32
    %87 = vector.broadcast %cst_29 : f32 to vector<8x96xf32>
    %88 = arith.addf %87, %86 : vector<8x96xf32>
    %89 = arith.divf %87, %88 : vector<8x96xf32>
    %90 = vector.extract_strided_slice %89 {offsets = [0, 0], sizes = [8, 32], strides = [1, 1]} : vector<8x96xf32> to vector<8x32xf32>
    %91 = vector.extract_strided_slice %89 {offsets = [0, 32], sizes = [8, 32], strides = [1, 1]} : vector<8x96xf32> to vector<8x32xf32>
    %92 = vector.extract_strided_slice %89 {offsets = [0, 64], sizes = [8, 32], strides = [1, 1]} : vector<8x96xf32> to vector<8x32xf32>
    %93 = vector.extract_strided_slice %83 {offsets = [0, 96], sizes = [8, 32], strides = [1, 1]} : vector<8x128xf32> to vector<8x32xf32>
    %94 = math.tanh %93 : vector<8x32xf32>
    %95 = arith.mulf %91, %75 : vector<8x32xf32>
    %96 = arith.mulf %90, %94 : vector<8x32xf32>
    %97 = arith.addf %95, %96 : vector<8x32xf32>
    %98 = math.tanh %97 : vector<8x32xf32>
    %99 = arith.mulf %92, %98 : vector<8x32xf32>
    %100 = arith.maximumf %78, %99 : vector<8x32xf32>
    %c4_i32 = arith.constant 4 : i32
    %101 = arith.index_cast %c4_i32 : i32 to index
    %c0_30 = arith.constant 0 : index
    %c0_31 = arith.constant 0 : index
    %102 = vector.load %arg6[%101, %c0_30, %c0_31] : memref<16x8x128xf32, #tpu.memory_space<vmem>>, vector<1x8x128xf32>
    %103 = vector.shape_cast %102 : vector<1x8x128xf32> to vector<8x128xf32>
    %cst_32 = arith.constant dense<0.000000e+00> : vector<8x128xf32>
    %104 = tpu.matmul %99, %9, %cst_32 {dimension_numbers = #tpu.dot_dimension_numbers<[1], [0], [0], [1], [0, 0, 1, 1], [], []>} : vector<8x32xf32>, vector<32x128xf32>, vector<8x128xf32> -> vector<8x128xf32>
    %105 = arith.addf %103, %104 : vector<8x128xf32>
    %106 = vector.extract_strided_slice %105 {offsets = [0, 0], sizes = [8, 96], strides = [1, 1]} : vector<8x128xf32> to vector<8x96xf32>
    %107 = arith.negf %106 : vector<8x96xf32>
    %108 = math.exp %107 : vector<8x96xf32>
    %cst_33 = arith.constant 1.000000e+00 : f32
    %109 = vector.broadcast %cst_33 : f32 to vector<8x96xf32>
    %110 = arith.addf %109, %108 : vector<8x96xf32>
    %111 = arith.divf %109, %110 : vector<8x96xf32>
    %112 = vector.extract_strided_slice %111 {offsets = [0, 0], sizes = [8, 32], strides = [1, 1]} : vector<8x96xf32> to vector<8x32xf32>
    %113 = vector.extract_strided_slice %111 {offsets = [0, 32], sizes = [8, 32], strides = [1, 1]} : vector<8x96xf32> to vector<8x32xf32>
    %114 = vector.extract_strided_slice %111 {offsets = [0, 64], sizes = [8, 32], strides = [1, 1]} : vector<8x96xf32> to vector<8x32xf32>
    %115 = vector.extract_strided_slice %105 {offsets = [0, 96], sizes = [8, 32], strides = [1, 1]} : vector<8x128xf32> to vector<8x32xf32>
    %116 = math.tanh %115 : vector<8x32xf32>
    %117 = arith.mulf %113, %97 : vector<8x32xf32>
    %118 = arith.mulf %112, %116 : vector<8x32xf32>
    %119 = arith.addf %117, %118 : vector<8x32xf32>
    %120 = math.tanh %119 : vector<8x32xf32>
    %121 = arith.mulf %114, %120 : vector<8x32xf32>
    %122 = arith.maximumf %100, %121 : vector<8x32xf32>
    %c5_i32 = arith.constant 5 : i32
    %123 = arith.index_cast %c5_i32 : i32 to index
    %c0_34 = arith.constant 0 : index
    %c0_35 = arith.constant 0 : index
    %124 = vector.load %arg6[%123, %c0_34, %c0_35] : memref<16x8x128xf32, #tpu.memory_space<vmem>>, vector<1x8x128xf32>
    %125 = vector.shape_cast %124 : vector<1x8x128xf32> to vector<8x128xf32>
    %cst_36 = arith.constant dense<0.000000e+00> : vector<8x128xf32>
    %126 = tpu.matmul %121, %9, %cst_36 {dimension_numbers = #tpu.dot_dimension_numbers<[1], [0], [0], [1], [0, 0, 1, 1], [], []>} : vector<8x32xf32>, vector<32x128xf32>, vector<8x128xf32> -> vector<8x128xf32>
    %127 = arith.addf %125, %126 : vector<8x128xf32>
    %128 = vector.extract_strided_slice %127 {offsets = [0, 0], sizes = [8, 96], strides = [1, 1]} : vector<8x128xf32> to vector<8x96xf32>
    %129 = arith.negf %128 : vector<8x96xf32>
    %130 = math.exp %129 : vector<8x96xf32>
    %cst_37 = arith.constant 1.000000e+00 : f32
    %131 = vector.broadcast %cst_37 : f32 to vector<8x96xf32>
    %132 = arith.addf %131, %130 : vector<8x96xf32>
    %133 = arith.divf %131, %132 : vector<8x96xf32>
    %134 = vector.extract_strided_slice %133 {offsets = [0, 0], sizes = [8, 32], strides = [1, 1]} : vector<8x96xf32> to vector<8x32xf32>
    %135 = vector.extract_strided_slice %133 {offsets = [0, 32], sizes = [8, 32], strides = [1, 1]} : vector<8x96xf32> to vector<8x32xf32>
    %136 = vector.extract_strided_slice %133 {offsets = [0, 64], sizes = [8, 32], strides = [1, 1]} : vector<8x96xf32> to vector<8x32xf32>
    %137 = vector.extract_strided_slice %127 {offsets = [0, 96], sizes = [8, 32], strides = [1, 1]} : vector<8x128xf32> to vector<8x32xf32>
    %138 = math.tanh %137 : vector<8x32xf32>
    %139 = arith.mulf %135, %119 : vector<8x32xf32>
    %140 = arith.mulf %134, %138 : vector<8x32xf32>
    %141 = arith.addf %139, %140 : vector<8x32xf32>
    %142 = math.tanh %141 : vector<8x32xf32>
    %143 = arith.mulf %136, %142 : vector<8x32xf32>
    %144 = arith.maximumf %122, %143 : vector<8x32xf32>
    %c6_i32 = arith.constant 6 : i32
    %145 = arith.index_cast %c6_i32 : i32 to index
    %c0_38 = arith.constant 0 : index
    %c0_39 = arith.constant 0 : index
    %146 = vector.load %arg6[%145, %c0_38, %c0_39] : memref<16x8x128xf32, #tpu.memory_space<vmem>>, vector<1x8x128xf32>
    %147 = vector.shape_cast %146 : vector<1x8x128xf32> to vector<8x128xf32>
    %cst_40 = arith.constant dense<0.000000e+00> : vector<8x128xf32>
    %148 = tpu.matmul %143, %9, %cst_40 {dimension_numbers = #tpu.dot_dimension_numbers<[1], [0], [0], [1], [0, 0, 1, 1], [], []>} : vector<8x32xf32>, vector<32x128xf32>, vector<8x128xf32> -> vector<8x128xf32>
    %149 = arith.addf %147, %148 : vector<8x128xf32>
    %150 = vector.extract_strided_slice %149 {offsets = [0, 0], sizes = [8, 96], strides = [1, 1]} : vector<8x128xf32> to vector<8x96xf32>
    %151 = arith.negf %150 : vector<8x96xf32>
    %152 = math.exp %151 : vector<8x96xf32>
    %cst_41 = arith.constant 1.000000e+00 : f32
    %153 = vector.broadcast %cst_41 : f32 to vector<8x96xf32>
    %154 = arith.addf %153, %152 : vector<8x96xf32>
    %155 = arith.divf %153, %154 : vector<8x96xf32>
    %156 = vector.extract_strided_slice %155 {offsets = [0, 0], sizes = [8, 32], strides = [1, 1]} : vector<8x96xf32> to vector<8x32xf32>
    %157 = vector.extract_strided_slice %155 {offsets = [0, 32], sizes = [8, 32], strides = [1, 1]} : vector<8x96xf32> to vector<8x32xf32>
    %158 = vector.extract_strided_slice %155 {offsets = [0, 64], sizes = [8, 32], strides = [1, 1]} : vector<8x96xf32> to vector<8x32xf32>
    %159 = vector.extract_strided_slice %149 {offsets = [0, 96], sizes = [8, 32], strides = [1, 1]} : vector<8x128xf32> to vector<8x32xf32>
    %160 = math.tanh %159 : vector<8x32xf32>
    %161 = arith.mulf %157, %141 : vector<8x32xf32>
    %162 = arith.mulf %156, %160 : vector<8x32xf32>
    %163 = arith.addf %161, %162 : vector<8x32xf32>
    %164 = math.tanh %163 : vector<8x32xf32>
    %165 = arith.mulf %158, %164 : vector<8x32xf32>
    %166 = arith.maximumf %144, %165 : vector<8x32xf32>
    %c7_i32 = arith.constant 7 : i32
    %167 = arith.index_cast %c7_i32 : i32 to index
    %c0_42 = arith.constant 0 : index
    %c0_43 = arith.constant 0 : index
    %168 = vector.load %arg6[%167, %c0_42, %c0_43] : memref<16x8x128xf32, #tpu.memory_space<vmem>>, vector<1x8x128xf32>
    %169 = vector.shape_cast %168 : vector<1x8x128xf32> to vector<8x128xf32>
    %cst_44 = arith.constant dense<0.000000e+00> : vector<8x128xf32>
    %170 = tpu.matmul %165, %9, %cst_44 {dimension_numbers = #tpu.dot_dimension_numbers<[1], [0], [0], [1], [0, 0, 1, 1], [], []>} : vector<8x32xf32>, vector<32x128xf32>, vector<8x128xf32> -> vector<8x128xf32>
    %171 = arith.addf %169, %170 : vector<8x128xf32>
    %172 = vector.extract_strided_slice %171 {offsets = [0, 0], sizes = [8, 96], strides = [1, 1]} : vector<8x128xf32> to vector<8x96xf32>
    %173 = arith.negf %172 : vector<8x96xf32>
    %174 = math.exp %173 : vector<8x96xf32>
    %cst_45 = arith.constant 1.000000e+00 : f32
    %175 = vector.broadcast %cst_45 : f32 to vector<8x96xf32>
    %176 = arith.addf %175, %174 : vector<8x96xf32>
    %177 = arith.divf %175, %176 : vector<8x96xf32>
    %178 = vector.extract_strided_slice %177 {offsets = [0, 0], sizes = [8, 32], strides = [1, 1]} : vector<8x96xf32> to vector<8x32xf32>
    %179 = vector.extract_strided_slice %177 {offsets = [0, 32], sizes = [8, 32], strides = [1, 1]} : vector<8x96xf32> to vector<8x32xf32>
    %180 = vector.extract_strided_slice %177 {offsets = [0, 64], sizes = [8, 32], strides = [1, 1]} : vector<8x96xf32> to vector<8x32xf32>
    %181 = vector.extract_strided_slice %171 {offsets = [0, 96], sizes = [8, 32], strides = [1, 1]} : vector<8x128xf32> to vector<8x32xf32>
    %182 = math.tanh %181 : vector<8x32xf32>
    %183 = arith.mulf %179, %163 : vector<8x32xf32>
    %184 = arith.mulf %178, %182 : vector<8x32xf32>
    %185 = arith.addf %183, %184 : vector<8x32xf32>
    %186 = math.tanh %185 : vector<8x32xf32>
    %187 = arith.mulf %180, %186 : vector<8x32xf32>
    %188 = arith.maximumf %166, %187 : vector<8x32xf32>
    %c8_i32 = arith.constant 8 : i32
    %189 = arith.index_cast %c8_i32 : i32 to index
    %c0_46 = arith.constant 0 : index
    %c0_47 = arith.constant 0 : index
    %190 = vector.load %arg6[%189, %c0_46, %c0_47] : memref<16x8x128xf32, #tpu.memory_space<vmem>>, vector<1x8x128xf32>
    %191 = vector.shape_cast %190 : vector<1x8x128xf32> to vector<8x128xf32>
    %cst_48 = arith.constant dense<0.000000e+00> : vector<8x128xf32>
    %192 = tpu.matmul %187, %9, %cst_48 {dimension_numbers = #tpu.dot_dimension_numbers<[1], [0], [0], [1], [0, 0, 1, 1], [], []>} : vector<8x32xf32>, vector<32x128xf32>, vector<8x128xf32> -> vector<8x128xf32>
    %193 = arith.addf %191, %192 : vector<8x128xf32>
    %194 = vector.extract_strided_slice %193 {offsets = [0, 0], sizes = [8, 96], strides = [1, 1]} : vector<8x128xf32> to vector<8x96xf32>
    %195 = arith.negf %194 : vector<8x96xf32>
    %196 = math.exp %195 : vector<8x96xf32>
    %cst_49 = arith.constant 1.000000e+00 : f32
    %197 = vector.broadcast %cst_49 : f32 to vector<8x96xf32>
    %198 = arith.addf %197, %196 : vector<8x96xf32>
    %199 = arith.divf %197, %198 : vector<8x96xf32>
    %200 = vector.extract_strided_slice %199 {offsets = [0, 0], sizes = [8, 32], strides = [1, 1]} : vector<8x96xf32> to vector<8x32xf32>
    %201 = vector.extract_strided_slice %199 {offsets = [0, 32], sizes = [8, 32], strides = [1, 1]} : vector<8x96xf32> to vector<8x32xf32>
    %202 = vector.extract_strided_slice %199 {offsets = [0, 64], sizes = [8, 32], strides = [1, 1]} : vector<8x96xf32> to vector<8x32xf32>
    %203 = vector.extract_strided_slice %193 {offsets = [0, 96], sizes = [8, 32], strides = [1, 1]} : vector<8x128xf32> to vector<8x32xf32>
    %204 = math.tanh %203 : vector<8x32xf32>
    %205 = arith.mulf %201, %185 : vector<8x32xf32>
    %206 = arith.mulf %200, %204 : vector<8x32xf32>
    %207 = arith.addf %205, %206 : vector<8x32xf32>
    %208 = math.tanh %207 : vector<8x32xf32>
    %209 = arith.mulf %202, %208 : vector<8x32xf32>
    %210 = arith.maximumf %188, %209 : vector<8x32xf32>
    %c9_i32 = arith.constant 9 : i32
    %211 = arith.index_cast %c9_i32 : i32 to index
    %c0_50 = arith.constant 0 : index
    %c0_51 = arith.constant 0 : index
    %212 = vector.load %arg6[%211, %c0_50, %c0_51] : memref<16x8x128xf32, #tpu.memory_space<vmem>>, vector<1x8x128xf32>
    %213 = vector.shape_cast %212 : vector<1x8x128xf32> to vector<8x128xf32>
    %cst_52 = arith.constant dense<0.000000e+00> : vector<8x128xf32>
    %214 = tpu.matmul %209, %9, %cst_52 {dimension_numbers = #tpu.dot_dimension_numbers<[1], [0], [0], [1], [0, 0, 1, 1], [], []>} : vector<8x32xf32>, vector<32x128xf32>, vector<8x128xf32> -> vector<8x128xf32>
    %215 = arith.addf %213, %214 : vector<8x128xf32>
    %216 = vector.extract_strided_slice %215 {offsets = [0, 0], sizes = [8, 96], strides = [1, 1]} : vector<8x128xf32> to vector<8x96xf32>
    %217 = arith.negf %216 : vector<8x96xf32>
    %218 = math.exp %217 : vector<8x96xf32>
    %cst_53 = arith.constant 1.000000e+00 : f32
    %219 = vector.broadcast %cst_53 : f32 to vector<8x96xf32>
    %220 = arith.addf %219, %218 : vector<8x96xf32>
    %221 = arith.divf %219, %220 : vector<8x96xf32>
    %222 = vector.extract_strided_slice %221 {offsets = [0, 0], sizes = [8, 32], strides = [1, 1]} : vector<8x96xf32> to vector<8x32xf32>
    %223 = vector.extract_strided_slice %221 {offsets = [0, 32], sizes = [8, 32], strides = [1, 1]} : vector<8x96xf32> to vector<8x32xf32>
    %224 = vector.extract_strided_slice %221 {offsets = [0, 64], sizes = [8, 32], strides = [1, 1]} : vector<8x96xf32> to vector<8x32xf32>
    %225 = vector.extract_strided_slice %215 {offsets = [0, 96], sizes = [8, 32], strides = [1, 1]} : vector<8x128xf32> to vector<8x32xf32>
    %226 = math.tanh %225 : vector<8x32xf32>
    %227 = arith.mulf %223, %207 : vector<8x32xf32>
    %228 = arith.mulf %222, %226 : vector<8x32xf32>
    %229 = arith.addf %227, %228 : vector<8x32xf32>
    %230 = math.tanh %229 : vector<8x32xf32>
    %231 = arith.mulf %224, %230 : vector<8x32xf32>
    %232 = arith.maximumf %210, %231 : vector<8x32xf32>
    %c10_i32 = arith.constant 10 : i32
    %233 = arith.index_cast %c10_i32 : i32 to index
    %c0_54 = arith.constant 0 : index
    %c0_55 = arith.constant 0 : index
    %234 = vector.load %arg6[%233, %c0_54, %c0_55] : memref<16x8x128xf32, #tpu.memory_space<vmem>>, vector<1x8x128xf32>
    %235 = vector.shape_cast %234 : vector<1x8x128xf32> to vector<8x128xf32>
    %cst_56 = arith.constant dense<0.000000e+00> : vector<8x128xf32>
    %236 = tpu.matmul %231, %9, %cst_56 {dimension_numbers = #tpu.dot_dimension_numbers<[1], [0], [0], [1], [0, 0, 1, 1], [], []>} : vector<8x32xf32>, vector<32x128xf32>, vector<8x128xf32> -> vector<8x128xf32>
    %237 = arith.addf %235, %236 : vector<8x128xf32>
    %238 = vector.extract_strided_slice %237 {offsets = [0, 0], sizes = [8, 96], strides = [1, 1]} : vector<8x128xf32> to vector<8x96xf32>
    %239 = arith.negf %238 : vector<8x96xf32>
    %240 = math.exp %239 : vector<8x96xf32>
    %cst_57 = arith.constant 1.000000e+00 : f32
    %241 = vector.broadcast %cst_57 : f32 to vector<8x96xf32>
    %242 = arith.addf %241, %240 : vector<8x96xf32>
    %243 = arith.divf %241, %242 : vector<8x96xf32>
    %244 = vector.extract_strided_slice %243 {offsets = [0, 0], sizes = [8, 32], strides = [1, 1]} : vector<8x96xf32> to vector<8x32xf32>
    %245 = vector.extract_strided_slice %243 {offsets = [0, 32], sizes = [8, 32], strides = [1, 1]} : vector<8x96xf32> to vector<8x32xf32>
    %246 = vector.extract_strided_slice %243 {offsets = [0, 64], sizes = [8, 32], strides = [1, 1]} : vector<8x96xf32> to vector<8x32xf32>
    %247 = vector.extract_strided_slice %237 {offsets = [0, 96], sizes = [8, 32], strides = [1, 1]} : vector<8x128xf32> to vector<8x32xf32>
    %248 = math.tanh %247 : vector<8x32xf32>
    %249 = arith.mulf %245, %229 : vector<8x32xf32>
    %250 = arith.mulf %244, %248 : vector<8x32xf32>
    %251 = arith.addf %249, %250 : vector<8x32xf32>
    %252 = math.tanh %251 : vector<8x32xf32>
    %253 = arith.mulf %246, %252 : vector<8x32xf32>
    %254 = arith.maximumf %232, %253 : vector<8x32xf32>
    %c11_i32 = arith.constant 11 : i32
    %255 = arith.index_cast %c11_i32 : i32 to index
    %c0_58 = arith.constant 0 : index
    %c0_59 = arith.constant 0 : index
    %256 = vector.load %arg6[%255, %c0_58, %c0_59] : memref<16x8x128xf32, #tpu.memory_space<vmem>>, vector<1x8x128xf32>
    %257 = vector.shape_cast %256 : vector<1x8x128xf32> to vector<8x128xf32>
    %cst_60 = arith.constant dense<0.000000e+00> : vector<8x128xf32>
    %258 = tpu.matmul %253, %9, %cst_60 {dimension_numbers = #tpu.dot_dimension_numbers<[1], [0], [0], [1], [0, 0, 1, 1], [], []>} : vector<8x32xf32>, vector<32x128xf32>, vector<8x128xf32> -> vector<8x128xf32>
    %259 = arith.addf %257, %258 : vector<8x128xf32>
    %260 = vector.extract_strided_slice %259 {offsets = [0, 0], sizes = [8, 96], strides = [1, 1]} : vector<8x128xf32> to vector<8x96xf32>
    %261 = arith.negf %260 : vector<8x96xf32>
    %262 = math.exp %261 : vector<8x96xf32>
    %cst_61 = arith.constant 1.000000e+00 : f32
    %263 = vector.broadcast %cst_61 : f32 to vector<8x96xf32>
    %264 = arith.addf %263, %262 : vector<8x96xf32>
    %265 = arith.divf %263, %264 : vector<8x96xf32>
    %266 = vector.extract_strided_slice %265 {offsets = [0, 0], sizes = [8, 32], strides = [1, 1]} : vector<8x96xf32> to vector<8x32xf32>
    %267 = vector.extract_strided_slice %265 {offsets = [0, 32], sizes = [8, 32], strides = [1, 1]} : vector<8x96xf32> to vector<8x32xf32>
    %268 = vector.extract_strided_slice %265 {offsets = [0, 64], sizes = [8, 32], strides = [1, 1]} : vector<8x96xf32> to vector<8x32xf32>
    %269 = vector.extract_strided_slice %259 {offsets = [0, 96], sizes = [8, 32], strides = [1, 1]} : vector<8x128xf32> to vector<8x32xf32>
    %270 = math.tanh %269 : vector<8x32xf32>
    %271 = arith.mulf %267, %251 : vector<8x32xf32>
    %272 = arith.mulf %266, %270 : vector<8x32xf32>
    %273 = arith.addf %271, %272 : vector<8x32xf32>
    %274 = math.tanh %273 : vector<8x32xf32>
    %275 = arith.mulf %268, %274 : vector<8x32xf32>
    %276 = arith.maximumf %254, %275 : vector<8x32xf32>
    %c12_i32 = arith.constant 12 : i32
    %277 = arith.index_cast %c12_i32 : i32 to index
    %c0_62 = arith.constant 0 : index
    %c0_63 = arith.constant 0 : index
    %278 = vector.load %arg6[%277, %c0_62, %c0_63] : memref<16x8x128xf32, #tpu.memory_space<vmem>>, vector<1x8x128xf32>
    %279 = vector.shape_cast %278 : vector<1x8x128xf32> to vector<8x128xf32>
    %cst_64 = arith.constant dense<0.000000e+00> : vector<8x128xf32>
    %280 = tpu.matmul %275, %9, %cst_64 {dimension_numbers = #tpu.dot_dimension_numbers<[1], [0], [0], [1], [0, 0, 1, 1], [], []>} : vector<8x32xf32>, vector<32x128xf32>, vector<8x128xf32> -> vector<8x128xf32>
    %281 = arith.addf %279, %280 : vector<8x128xf32>
    %282 = vector.extract_strided_slice %281 {offsets = [0, 0], sizes = [8, 96], strides = [1, 1]} : vector<8x128xf32> to vector<8x96xf32>
    %283 = arith.negf %282 : vector<8x96xf32>
    %284 = math.exp %283 : vector<8x96xf32>
    %cst_65 = arith.constant 1.000000e+00 : f32
    %285 = vector.broadcast %cst_65 : f32 to vector<8x96xf32>
    %286 = arith.addf %285, %284 : vector<8x96xf32>
    %287 = arith.divf %285, %286 : vector<8x96xf32>
    %288 = vector.extract_strided_slice %287 {offsets = [0, 0], sizes = [8, 32], strides = [1, 1]} : vector<8x96xf32> to vector<8x32xf32>
    %289 = vector.extract_strided_slice %287 {offsets = [0, 32], sizes = [8, 32], strides = [1, 1]} : vector<8x96xf32> to vector<8x32xf32>
    %290 = vector.extract_strided_slice %287 {offsets = [0, 64], sizes = [8, 32], strides = [1, 1]} : vector<8x96xf32> to vector<8x32xf32>
    %291 = vector.extract_strided_slice %281 {offsets = [0, 96], sizes = [8, 32], strides = [1, 1]} : vector<8x128xf32> to vector<8x32xf32>
    %292 = math.tanh %291 : vector<8x32xf32>
    %293 = arith.mulf %289, %273 : vector<8x32xf32>
    %294 = arith.mulf %288, %292 : vector<8x32xf32>
    %295 = arith.addf %293, %294 : vector<8x32xf32>
    %296 = math.tanh %295 : vector<8x32xf32>
    %297 = arith.mulf %290, %296 : vector<8x32xf32>
    %298 = arith.maximumf %276, %297 : vector<8x32xf32>
    %c13_i32 = arith.constant 13 : i32
    %299 = arith.index_cast %c13_i32 : i32 to index
    %c0_66 = arith.constant 0 : index
    %c0_67 = arith.constant 0 : index
    %300 = vector.load %arg6[%299, %c0_66, %c0_67] : memref<16x8x128xf32, #tpu.memory_space<vmem>>, vector<1x8x128xf32>
    %301 = vector.shape_cast %300 : vector<1x8x128xf32> to vector<8x128xf32>
    %cst_68 = arith.constant dense<0.000000e+00> : vector<8x128xf32>
    %302 = tpu.matmul %297, %9, %cst_68 {dimension_numbers = #tpu.dot_dimension_numbers<[1], [0], [0], [1], [0, 0, 1, 1], [], []>} : vector<8x32xf32>, vector<32x128xf32>, vector<8x128xf32> -> vector<8x128xf32>
    %303 = arith.addf %301, %302 : vector<8x128xf32>
    %304 = vector.extract_strided_slice %303 {offsets = [0, 0], sizes = [8, 96], strides = [1, 1]} : vector<8x128xf32> to vector<8x96xf32>
    %305 = arith.negf %304 : vector<8x96xf32>
    %306 = math.exp %305 : vector<8x96xf32>
    %cst_69 = arith.constant 1.000000e+00 : f32
    %307 = vector.broadcast %cst_69 : f32 to vector<8x96xf32>
    %308 = arith.addf %307, %306 : vector<8x96xf32>
    %309 = arith.divf %307, %308 : vector<8x96xf32>
    %310 = vector.extract_strided_slice %309 {offsets = [0, 0], sizes = [8, 32], strides = [1, 1]} : vector<8x96xf32> to vector<8x32xf32>
    %311 = vector.extract_strided_slice %309 {offsets = [0, 32], sizes = [8, 32], strides = [1, 1]} : vector<8x96xf32> to vector<8x32xf32>
    %312 = vector.extract_strided_slice %309 {offsets = [0, 64], sizes = [8, 32], strides = [1, 1]} : vector<8x96xf32> to vector<8x32xf32>
    %313 = vector.extract_strided_slice %303 {offsets = [0, 96], sizes = [8, 32], strides = [1, 1]} : vector<8x128xf32> to vector<8x32xf32>
    %314 = math.tanh %313 : vector<8x32xf32>
    %315 = arith.mulf %311, %295 : vector<8x32xf32>
    %316 = arith.mulf %310, %314 : vector<8x32xf32>
    %317 = arith.addf %315, %316 : vector<8x32xf32>
    %318 = math.tanh %317 : vector<8x32xf32>
    %319 = arith.mulf %312, %318 : vector<8x32xf32>
    %320 = arith.maximumf %298, %319 : vector<8x32xf32>
    %c14_i32 = arith.constant 14 : i32
    %321 = arith.index_cast %c14_i32 : i32 to index
    %c0_70 = arith.constant 0 : index
    %c0_71 = arith.constant 0 : index
    %322 = vector.load %arg6[%321, %c0_70, %c0_71] : memref<16x8x128xf32, #tpu.memory_space<vmem>>, vector<1x8x128xf32>
    %323 = vector.shape_cast %322 : vector<1x8x128xf32> to vector<8x128xf32>
    %cst_72 = arith.constant dense<0.000000e+00> : vector<8x128xf32>
    %324 = tpu.matmul %319, %9, %cst_72 {dimension_numbers = #tpu.dot_dimension_numbers<[1], [0], [0], [1], [0, 0, 1, 1], [], []>} : vector<8x32xf32>, vector<32x128xf32>, vector<8x128xf32> -> vector<8x128xf32>
    %325 = arith.addf %323, %324 : vector<8x128xf32>
    %326 = vector.extract_strided_slice %325 {offsets = [0, 0], sizes = [8, 96], strides = [1, 1]} : vector<8x128xf32> to vector<8x96xf32>
    %327 = arith.negf %326 : vector<8x96xf32>
    %328 = math.exp %327 : vector<8x96xf32>
    %cst_73 = arith.constant 1.000000e+00 : f32
    %329 = vector.broadcast %cst_73 : f32 to vector<8x96xf32>
    %330 = arith.addf %329, %328 : vector<8x96xf32>
    %331 = arith.divf %329, %330 : vector<8x96xf32>
    %332 = vector.extract_strided_slice %331 {offsets = [0, 0], sizes = [8, 32], strides = [1, 1]} : vector<8x96xf32> to vector<8x32xf32>
    %333 = vector.extract_strided_slice %331 {offsets = [0, 32], sizes = [8, 32], strides = [1, 1]} : vector<8x96xf32> to vector<8x32xf32>
    %334 = vector.extract_strided_slice %331 {offsets = [0, 64], sizes = [8, 32], strides = [1, 1]} : vector<8x96xf32> to vector<8x32xf32>
    %335 = vector.extract_strided_slice %325 {offsets = [0, 96], sizes = [8, 32], strides = [1, 1]} : vector<8x128xf32> to vector<8x32xf32>
    %336 = math.tanh %335 : vector<8x32xf32>
    %337 = arith.mulf %333, %317 : vector<8x32xf32>
    %338 = arith.mulf %332, %336 : vector<8x32xf32>
    %339 = arith.addf %337, %338 : vector<8x32xf32>
    %340 = math.tanh %339 : vector<8x32xf32>
    %341 = arith.mulf %334, %340 : vector<8x32xf32>
    %342 = arith.maximumf %320, %341 : vector<8x32xf32>
    %c15_i32 = arith.constant 15 : i32
    %343 = arith.index_cast %c15_i32 : i32 to index
    %c0_74 = arith.constant 0 : index
    %c0_75 = arith.constant 0 : index
    %344 = vector.load %arg6[%343, %c0_74, %c0_75] : memref<16x8x128xf32, #tpu.memory_space<vmem>>, vector<1x8x128xf32>
    %345 = vector.shape_cast %344 : vector<1x8x128xf32> to vector<8x128xf32>
    %cst_76 = arith.constant dense<0.000000e+00> : vector<8x128xf32>
    %346 = tpu.matmul %341, %9, %cst_76 {dimension_numbers = #tpu.dot_dimension_numbers<[1], [0], [0], [1], [0, 0, 1, 1], [], []>} : vector<8x32xf32>, vector<32x128xf32>, vector<8x128xf32> -> vector<8x128xf32>
    %347 = arith.addf %345, %346 : vector<8x128xf32>
    %348 = vector.extract_strided_slice %347 {offsets = [0, 0], sizes = [8, 96], strides = [1, 1]} : vector<8x128xf32> to vector<8x96xf32>
    %349 = arith.negf %348 : vector<8x96xf32>
    %350 = math.exp %349 : vector<8x96xf32>
    %cst_77 = arith.constant 1.000000e+00 : f32
    %351 = vector.broadcast %cst_77 : f32 to vector<8x96xf32>
    %352 = arith.addf %351, %350 : vector<8x96xf32>
    %353 = arith.divf %351, %352 : vector<8x96xf32>
    %354 = vector.extract_strided_slice %353 {offsets = [0, 0], sizes = [8, 32], strides = [1, 1]} : vector<8x96xf32> to vector<8x32xf32>
    %355 = vector.extract_strided_slice %353 {offsets = [0, 32], sizes = [8, 32], strides = [1, 1]} : vector<8x96xf32> to vector<8x32xf32>
    %356 = vector.extract_strided_slice %353 {offsets = [0, 64], sizes = [8, 32], strides = [1, 1]} : vector<8x96xf32> to vector<8x32xf32>
    %357 = vector.extract_strided_slice %347 {offsets = [0, 96], sizes = [8, 32], strides = [1, 1]} : vector<8x128xf32> to vector<8x32xf32>
    %358 = math.tanh %357 : vector<8x32xf32>
    %359 = arith.mulf %355, %339 : vector<8x32xf32>
    %360 = arith.mulf %354, %358 : vector<8x32xf32>
    %361 = arith.addf %359, %360 : vector<8x32xf32>
    %362 = math.tanh %361 : vector<8x32xf32>
    %363 = arith.mulf %356, %362 : vector<8x32xf32>
    %364 = arith.maximumf %342, %363 : vector<8x32xf32>
    %c16_i32 = arith.constant 16 : i32
    %c0_78 = arith.constant 0 : index
    %c0_79 = arith.constant 0 : index
    %365 = vector.load %arg5[%c0_78, %c0_79] : memref<8x32xf32, #tpu.memory_space<vmem>>, vector<8x32xf32>
    tpu.vector_store %arg5[%c0_78, %c0_79], %364 {strides = array<i32>} : memref<8x32xf32, #tpu.memory_space<vmem>>, vector<8x32xf32>,
    return
  }
  func.func @transform_0(%arg0: i32) -> (i32, i32, i32) {
    %c0_i32 = arith.constant 0 : i32
    %c0_i32_0 = arith.constant 0 : i32
    %c0_i32_1 = arith.constant 0 : i32
    return %c0_i32, %arg0, %c0_i32_0 : i32, i32, i32
  }
  func.func @transform_1(%arg0: i32) -> (i32, i32) {
    %c0_i32 = arith.constant 0 : i32
    %c0_i32_0 = arith.constant 0 : i32
    %c0_i32_1 = arith.constant 0 : i32
    return %c0_i32, %c0_i32_0 : i32, i32
  }
  func.func @transform_2(%arg0: i32) -> (i32, i32) {
    %c0_i32 = arith.constant 0 : i32
    %c0_i32_0 = arith.constant 0 : i32
    %c0_i32_1 = arith.constant 0 : i32
    return %c0_i32, %c0_i32_0 : i32, i32
  }
  func.func @transform_3(%arg0: i32) -> (i32, i32) {
    %c0_i32 = arith.constant 0 : i32
    %c0_i32_0 = arith.constant 0 : i32
    %c0_i32_1 = arith.constant 0 : i32
    return %c0_i32, %c0_i32_0 : i32, i32
  }
  func.func @transform_4(%arg0: i32) -> (i32, i32) {
    %c0_i32 = arith.constant 0 : i32
    %c0_i32_0 = arith.constant 0 : i32
    return %arg0, %c0_i32 : i32, i32
  }
}

</mosaic_0001>

<llo_original>
// kernel: discriminator_forward.1
$region0: #{discriminator_forward.1}
  #allocation0 [shape = 'u32[]', space=smem, size = 0x4, offset = 0x4, fixed_abs, tag = 'smem constant byte address 0x4 - core index']
  #allocation1 [shape = 'u32[72,128]{1,0:T(1,128)}', space=vmem, size = 0x9000, scoped, tag = 'internal scratch']
  #allocation2 [shape = 'f32[16,8,128]{2,1,0:T(8,128)}', space=vmem, size = 0x10000, scoped, tag = 'scratch operand']
  %s0 = inlined_call_operand.vmem [shape: f32[16,8,32], index: 0, kind: input, shape index: {}]
  %s1 = inlined_call_operand.vmem [shape: f32[32,128], index: 1, kind: input, shape index: {}]
  %s2 = inlined_call_operand.vmem [shape: f32[32,128], index: 2, kind: input, shape index: {}]
  %s3 = inlined_call_operand.vmem [shape: f32[1,128], index: 3, kind: input, shape index: {}]
  %s4 = inlined_call_operand.vmem [shape: f32[8,32], index: 4, kind: output, shape index: {}]
  %s5 = sld [smem:[#allocation0]]
  $region26: #{discriminator_forward.1} parent=0
    _
  %s7 = ssub.s32 1, %s5
  %s8 = scalar_select 0, %s7, %s5
  // Predicated region
  $region2: #{discriminator_forward.1} parent=0 // pred_check
    _
  $region3: #{discriminator_forward.1} parent=0 // pred_check_branch
    %10 = sbr.rel (0) target = $region5
  $region4: #{discriminator_forward.1} parent=0 // pred_region
    _
  $region5: #{discriminator_forward.1} parent=0 // pred_fallthru
    _
  // Predicated region
  $region6: #{discriminator_forward.1} parent=0 // pred_check
    _
  $region7: #{discriminator_forward.1} parent=0 // pred_check_branch
    %12 = sbr.rel (0) target = $region9
  $region8: #{discriminator_forward.1} parent=0 // pred_region
    _
  $region9: #{discriminator_forward.1} parent=0 // pred_fallthru
    _
  // Predicated region
  $region10: #{discriminator_forward.1} parent=0 // pred_check
    _
  $region11: #{discriminator_forward.1} parent=0 // pred_check_branch
    %14 = sbr.rel (0) target = $region13
  $region12: #{discriminator_forward.1} parent=0 // pred_region
    _
  $region13: #{discriminator_forward.1} parent=0 // pred_fallthru
    _
  // Predicated region
  $region14: #{discriminator_forward.1} parent=0 // pred_check
    _
  $region15: #{discriminator_forward.1} parent=0 // pred_check_branch
    %16 = sbr.rel (0) target = $region17
  $region16: #{discriminator_forward.1} parent=0 // pred_region
    _
  $region17: #{discriminator_forward.1} parent=0 // pred_fallthru
    _
  %v17 = vld [vmem:[%s0] sm:$0xff]
  %v18 = vld [vmem:[%s0 + $0x8] sm:$0xff]
  %v19 = vld [vmem:[%s0 + $0x10] sm:$0xff]
  %v20 = vld [vmem:[%s0 + $0x18] sm:$0xff]
  %v21 = vld [vmem:[%s0 + $0x20] sm:$0xff]
  %v22 = vld [vmem:[%s0 + $0x28] sm:$0xff]
  %v23 = vld [vmem:[%s0 + $0x30] sm:$0xff]
  %v24 = vld [vmem:[%s0 + $0x38] sm:$0xff]
  %v25 = vld [vmem:[%s0 + $0x40] sm:$0xff]
  %v26 = vld [vmem:[%s0 + $0x48] sm:$0xff]
  %v27 = vld [vmem:[%s0 + $0x50] sm:$0xff]
  %v28 = vld [vmem:[%s0 + $0x58] sm:$0xff]
  %v29 = vld [vmem:[%s0 + $0x60] sm:$0xff]
  %v30 = vld [vmem:[%s0 + $0x68] sm:$0xff]
  %v31 = vld [vmem:[%s0 + $0x70] sm:$0xff]
  %v32 = vld [vmem:[%s0 + $0x78] sm:$0xff]
  %v33 = vld [vmem:[%s1] sm:$0xff]
  %v34 = vld [vmem:[%s1 + $0x8] sm:$0xff]
  %v35 = vld [vmem:[%s1 + $0x10] sm:$0xff]
  %v36 = vld [vmem:[%s1 + $0x18] sm:$0xff]
  %v37 = vld [vmem:[%s3] sm:$0x1]
  %v39 = vperm.slane %v37, 0
  %vm41 = vcmask 261120
  %v43 = vsel %vm41, %v17, 0
  %v46 = vsel %vm41, %v18, 0
  %v49 = vsel %vm41, %v19, 0
  %v52 = vsel %vm41, %v20, 0
  %v55 = vsel %vm41, %v21, 0
  %v58 = vsel %vm41, %v22, 0
  %v61 = vsel %vm41, %v23, 0
  %v64 = vsel %vm41, %v24, 0
  %v67 = vsel %vm41, %v25, 0
  %v70 = vsel %vm41, %v26, 0
  %v73 = vsel %vm41, %v27, 0
  %v76 = vsel %vm41, %v28, 0
  %v79 = vsel %vm41, %v29, 0
  %v82 = vsel %vm41, %v30, 0
  %v85 = vsel %vm41, %v31, 0
  %v88 = vsel %vm41, %v32, 0
  %90 = vmatpush.msra.mxu0 0.0
  %91 = vmatpush.msra.mxu0 0.0
  %92 = vmatpush.msra.mxu0 0.0
  %93 = vmatpush.msra.mxu0 0.0
  %94 = vmatpush.msra.mxu0 0.0
  %95 = vmatpush.msra.mxu0 0.0
  %96 = vmatpush.msra.mxu0 0.0
  %97 = vmatpush.msra.mxu0 0.0
  %98 = vmatpush.msra.mxu0 0.0
  %99 = vmatpush.msra.mxu0 0.0
  %100 = vmatpush.msra.mxu0 0.0
  %101 = vmatpush.msra.mxu0 0.0
  %102 = vmatpush.msra.mxu0 %v36
  %103 = vmatpush.msra.mxu0 %v35
  %104 = vmatpush.msra.mxu0 %v34
  %105 = vmatpush.msra.mxu0 %v33
  %106 = vmatmul.f32.gmra.mxu0 %v43
  %v107 = vpop.f32.mrf.mxu0
  %v108 = vadd.f32 %v39, %v107
  %109 = vmatmul.f32.gmra.mxu0 %v46
  %v110 = vpop.f32.mrf.mxu0
  %v111 = vadd.f32 %v39, %v110
  %112 = vmatmul.f32.gmra.mxu0 %v49
  %v113 = vpop.f32.mrf.mxu0
  %v114 = vadd.f32 %v39, %v113
  %115 = vmatmul.f32.gmra.mxu0 %v52
  %v116 = vpop.f32.mrf.mxu0
  %v117 = vadd.f32 %v39, %v116
  %118 = vmatmul.f32.gmra.mxu0 %v55
  %v119 = vpop.f32.mrf.mxu0
  %v120 = vadd.f32 %v39, %v119
  %121 = vmatmul.f32.gmra.mxu0 %v58
  %v122 = vpop.f32.mrf.mxu0
  %v123 = vadd.f32 %v39, %v122
  %124 = vmatmul.f32.gmra.mxu0 %v61
  %v125 = vpop.f32.mrf.mxu0
  %v126 = vadd.f32 %v39, %v125
  %127 = vmatmul.f32.gmra.mxu0 %v64
  %v128 = vpop.f32.mrf.mxu0
  %v129 = vadd.f32 %v39, %v128
  %130 = vmatmul.f32.gmra.mxu0 %v67
  %v131 = vpop.f32.mrf.mxu0
  %v132 = vadd.f32 %v39, %v131
  %133 = vmatmul.f32.gmra.mxu0 %v70
  %v134 = vpop.f32.mrf.mxu0
  %v135 = vadd.f32 %v39, %v134
  %136 = vmatmul.f32.gmra.mxu0 %v73
  %v137 = vpop.f32.mrf.mxu0
  %v138 = vadd.f32 %v39, %v137
  %139 = vmatmul.f32.gmra.mxu0 %v76
  %v140 = vpop.f32.mrf.mxu0
  %v141 = vadd.f32 %v39, %v140
  %142 = vmatmul.f32.gmra.mxu0 %v79
  %v143 = vpop.f32.mrf.mxu0
  %v144 = vadd.f32 %v39, %v143
  %145 = vmatmul.f32.gmra.mxu0 %v82
  %v146 = vpop.f32.mrf.mxu0
  %v147 = vadd.f32 %v39, %v146
  %148 = vmatmul.f32.gmra.mxu0 %v85
  %v149 = vpop.f32.mrf.mxu0
  %v150 = vadd.f32 %v39, %v149
  %151 = vmatmul.f32.gmra.mxu0 %v88
  %v152 = vpop.f32.mrf.mxu0
  %v153 = vadd.f32 %v39, %v152
  %154 = vdwg.mxu0
  %155 = vst [vmem:[#allocation2] sm:$0xff] %v108
  %156 = vst [vmem:[#allocation2 + $0x8] sm:$0xff] %v111
  %157 = vst [vmem:[#allocation2 + $0x10] sm:$0xff] %v114
  %158 = vst [vmem:[#allocation2 + $0x18] sm:$0xff] %v117
  %159 = vst [vmem:[#allocation2 + $0x20] sm:$0xff] %v120
  %160 = vst [vmem:[#allocation2 + $0x28] sm:$0xff] %v123
  %161 = vst [vmem:[#allocation2 + $0x30] sm:$0xff] %v126
  %162 = vst [vmem:[#allocation2 + $0x38] sm:$0xff] %v129
  %163 = vst [vmem:[#allocation2 + $0x40] sm:$0xff] %v132
  %164 = vst [vmem:[#allocation2 + $0x48] sm:$0xff] %v135
  %165 = vst [vmem:[#allocation2 + $0x50] sm:$0xff] %v138
  %166 = vst [vmem:[#allocation2 + $0x58] sm:$0xff] %v141
  %167 = vst [vmem:[#allocation2 + $0x60] sm:$0xff] %v144
  %168 = vst [vmem:[#allocation2 + $0x68] sm:$0xff] %v147
  %169 = vst [vmem:[#allocation2 + $0x70] sm:$0xff] %v150
  %170 = vst [vmem:[#allocation2 + $0x78] sm:$0xff] %v153
  %v171 = vld [vmem:[%s2] sm:$0xff]
  %v172 = vld [vmem:[%s2 + $0x8] sm:$0xff]
  %v173 = vld [vmem:[%s2 + $0x10] sm:$0xff]
  %v174 = vld [vmem:[%s2 + $0x18] sm:$0xff]
  %v175 = vld [vmem:[#allocation2] sm:$0xff]
  %v177 = vsel %vm41, 0.0, 0
  %179 = vmatpush.msra.mxu0 0.0
  %180 = vmatpush.msra.mxu0 0.0
  %181 = vmatpush.msra.mxu0 0.0
  %182 = vmatpush.msra.mxu0 0.0
  %183 = vmatpush.msra.mxu0 0.0
  %184 = vmatpush.msra.mxu0 0.0
  %185 = vmatpush.msra.mxu0 0.0
  %186 = vmatpush.msra.mxu0 0.0
  %187 = vmatpush.msra.mxu0 0.0
  %188 = vmatpush.msra.mxu0 0.0
  %189 = vmatpush.msra.mxu0 0.0
  %190 = vmatpush.msra.mxu0 0.0
  %191 = vmatpush.msra.mxu0 %v174
  %192 = vmatpush.msra.mxu0 %v173
  %193 = vmatpush.msra.mxu0 %v172
  %194 = vmatpush.msra.mxu0 %v171
  %195 = vmatmul.f32.gmra.mxu0 %v177
  %v196 = vpop.f32.mrf.mxu0
  %v197 = vadd.f32 0.0, %v196
  %198 = vdwg.mxu0
  %v199 = vadd.f32 %v175, %v197
  %v200 = vxor.u32 %v199, 2147483648
  %v201 = vmul.f32 %v200, 1.442695
  %v202 = vpow.pop %v201
  %v203 = vadd.f32 %v202, 1.0
  %v204 = vrcp.pop %v203
  %v205 = vmul.f32 %v203, %v204
  %v206 = vsub.f32 1.0, %v205
  %v207 = vmul.f32 %v204, %v206
  %v208 = vadd.f32 %v204, %v207
  %vm209 = vweird.f32 %v203
  %vm210 = vweird.f32 %v204
  %vm211 = vmor %vm209, %vm210
  %v212 = vsel %vm211, %v204, %v208
  %v213 = vand.u32 2147483647, %v203
  %vm214 = vcmp.eq.f32.partialorder %v213, 8.507059e+37
  %v215 = vand.u32 %v203, 2147483648
  %v216 = vor.u32 1.1754944e-38, %v215
  %v217 = vsel %vm214, %v216, %v212
  %v218 = vmul.f32 1.0, %v217
  %v219 = vtanh.pop %v199
  %v220 = vmul.f32 %v218, 0.0
  %222 = vrot.lane.b32.xlu0 %v219, 32
  %v223 = vpop.permute.xlu0 %222
  %v225 = vmul.f32 %v218, %v223
  %227 = vrot.lane.b32.xlu0 %v225, 32
  %v228 = vpop.permute.xlu0 %227
  %v230 = vadd.f32 %v220, %v228
  %v231 = vtanh.pop %v230
  %233 = vrot.lane.b32.xlu0 %v231, 32
  %v234 = vpop.permute.xlu0 %233
  %v236 = vmul.f32 %v218, %v234
  %s237 = scalar_lea.vmem [#allocation2], 8
  %v238 = vld [vmem:[%s237] sm:$0xff]
  %240 = vrot.lane.b32.xlu0 %v236, 64
  %v241 = vpop.permute.xlu0 %240
  %v242 = vsel %vm41, %v241, 0
  %244 = vmatpush.msra.mxu0 0.0
  %245 = vmatpush.msra.mxu0 0.0
  %246 = vmatpush.msra.mxu0 0.0
  %247 = vmatpush.msra.mxu0 0.0
  %248 = vmatpush.msra.mxu0 0.0
  %249 = vmatpush.msra.mxu0 0.0
  %250 = vmatpush.msra.mxu0 0.0
  %251 = vmatpush.msra.mxu0 0.0
  %252 = vmatpush.msra.mxu0 0.0
  %253 = vmatpush.msra.mxu0 0.0
  %254 = vmatpush.msra.mxu0 0.0
  %255 = vmatpush.msra.mxu0 0.0
  %256 = vmatpush.msra.mxu0 %v174
  %257 = vmatpush.msra.mxu0 %v173
  %258 = vmatpush.msra.mxu0 %v172
  %259 = vmatpush.msra.mxu0 %v171
  %260 = vmatmul.f32.gmra.mxu0 %v242
  %v261 = vpop.f32.mrf.mxu0
  %v262 = vadd.f32 0.0, %v261
  %263 = vdwg.mxu0
  %v264 = vadd.f32 %v238, %v262
  %v265 = vxor.u32 %v264, 2147483648
  %v266 = vmul.f32 %v265, 1.442695
  %v267 = vpow.pop %v266
  %v268 = vadd.f32 %v267, 1.0
  %v269 = vrcp.pop %v268
  %v270 = vmul.f32 %v268, %v269
  %v271 = vsub.f32 1.0, %v270
  %v272 = vmul.f32 %v269, %v271
  %v273 = vadd.f32 %v269, %v272
  %vm274 = vweird.f32 %v268
  %vm275 = vweird.f32 %v269
  %vm276 = vmor %vm274, %vm275
  %v277 = vsel %vm276, %v269, %v273
  %v278 = vand.u32 2147483647, %v268
  %vm279 = vcmp.eq.f32.partialorder %v278, 8.507059e+37
  %v280 = vand.u32 %v268, 2147483648
  %v281 = vor.u32 1.1754944e-38, %v280
  %v282 = vsel %vm279, %v281, %v277
  %v283 = vmul.f32 1.0, %v282
  %v284 = vtanh.pop %v264
  %v285 = vmul.f32 %v283, %v230
  %287 = vrot.lane.b32.xlu0 %v284, 32
  %v288 = vpop.permute.xlu0 %287
  %v290 = vmul.f32 %v283, %v288
  %292 = vrot.lane.b32.xlu0 %v290, 32
  %v293 = vpop.permute.xlu0 %292
  %v295 = vadd.f32 %v285, %v293
  %v296 = vtanh.pop %v295
  %298 = vrot.lane.b32.xlu0 %v296, 32
  %v299 = vpop.permute.xlu0 %298
  %v301 = vmul.f32 %v283, %v299
  %v302 = vmax.f32 %v236, %v301
  %s303 = scalar_lea.vmem [#allocation2], 16
  %v304 = vld [vmem:[%s303] sm:$0xff]
  %306 = vrot.lane.b32.xlu0 %v301, 64
  %v307 = vpop.permute.xlu0 %306
  %v308 = vsel %vm41, %v307, 0
  %310 = vmatpush.msra.mxu0 0.0
  %311 = vmatpush.msra.mxu0 0.0
  %312 = vmatpush.msra.mxu0 0.0
  %313 = vmatpush.msra.mxu0 0.0
  %314 = vmatpush.msra.mxu0 0.0
  %315 = vmatpush.msra.mxu0 0.0
  %316 = vmatpush.msra.mxu0 0.0
  %317 = vmatpush.msra.mxu0 0.0
  %318 = vmatpush.msra.mxu0 0.0
  %319 = vmatpush.msra.mxu0 0.0
  %320 = vmatpush.msra.mxu0 0.0
  %321 = vmatpush.msra.mxu0 0.0
  %322 = vmatpush.msra.mxu0 %v174
  %323 = vmatpush.msra.mxu0 %v173
  %324 = vmatpush.msra.mxu0 %v172
  %325 = vmatpush.msra.mxu0 %v171
  %326 = vmatmul.f32.gmra.mxu0 %v308
  %v327 = vpop.f32.mrf.mxu0
  %v328 = vadd.f32 0.0, %v327
  %329 = vdwg.mxu0
  %v330 = vadd.f32 %v304, %v328
  %v331 = vxor.u32 %v330, 2147483648
  %v332 = vmul.f32 %v331, 1.442695
  %v333 = vpow.pop %v332
  %v334 = vadd.f32 %v333, 1.0
  %v335 = vrcp.pop %v334
  %v336 = vmul.f32 %v334, %v335
  %v337 = vsub.f32 1.0, %v336
  %v338 = vmul.f32 %v335, %v337
  %v339 = vadd.f32 %v335, %v338
  %vm340 = vweird.f32 %v334
  %vm341 = vweird.f32 %v335
  %vm342 = vmor %vm340, %vm341
  %v343 = vsel %vm342, %v335, %v339
  %v344 = vand.u32 2147483647, %v334
  %vm345 = vcmp.eq.f32.partialorder %v344, 8.507059e+37
  %v346 = vand.u32 %v334, 2147483648
  %v347 = vor.u32 1.1754944e-38, %v346
  %v348 = vsel %vm345, %v347, %v343
  %v349 = vmul.f32 1.0, %v348
  %v350 = vtanh.pop %v330
  %v351 = vmul.f32 %v349, %v295
  %353 = vrot.lane.b32.xlu0 %v350, 32
  %v354 = vpop.permute.xlu0 %353
  %v356 = vmul.f32 %v349, %v354
  %358 = vrot.lane.b32.xlu0 %v356, 32
  %v359 = vpop.permute.xlu0 %358
  %v361 = vadd.f32 %v351, %v359
  %v362 = vtanh.pop %v361
  %364 = vrot.lane.b32.xlu0 %v362, 32
  %v365 = vpop.permute.xlu0 %364
  %v367 = vmul.f32 %v349, %v365
  %v368 = vmax.f32 %v302, %v367
  %s369 = scalar_lea.vmem [#allocation2], 24
  %v370 = vld [vmem:[%s369] sm:$0xff]
  %372 = vrot.lane.b32.xlu0 %v367, 64
  %v373 = vpop.permute.xlu0 %372
  %v374 = vsel %vm41, %v373, 0
  %376 = vmatpush.msra.mxu0 0.0
  %377 = vmatpush.msra.mxu0 0.0
  %378 = vmatpush.msra.mxu0 0.0
  %379 = vmatpush.msra.mxu0 0.0
  %380 = vmatpush.msra.mxu0 0.0
  %381 = vmatpush.msra.mxu0 0.0
  %382 = vmatpush.msra.mxu0 0.0
  %383 = vmatpush.msra.mxu0 0.0
  %384 = vmatpush.msra.mxu0 0.0
  %385 = vmatpush.msra.mxu0 0.0
  %386 = vmatpush.msra.mxu0 0.0
  %387 = vmatpush.msra.mxu0 0.0
  %388 = vmatpush.msra.mxu0 %v174
  %389 = vmatpush.msra.mxu0 %v173
  %390 = vmatpush.msra.mxu0 %v172
  %391 = vmatpush.msra.mxu0 %v171
  %392 = vmatmul.f32.gmra.mxu0 %v374
  %v393 = vpop.f32.mrf.mxu0
  %v394 = vadd.f32 0.0, %v393
  %395 = vdwg.mxu0
  %v396 = vadd.f32 %v370, %v394
  %v397 = vxor.u32 %v396, 2147483648
  %v398 = vmul.f32 %v397, 1.442695
  %v399 = vpow.pop %v398
  %v400 = vadd.f32 %v399, 1.0
  %v401 = vrcp.pop %v400
  %v402 = vmul.f32 %v400, %v401
  %v403 = vsub.f32 1.0, %v402
  %v404 = vmul.f32 %v401, %v403
  %v405 = vadd.f32 %v401, %v404
  %vm406 = vweird.f32 %v400
  %vm407 = vweird.f32 %v401
  %vm408 = vmor %vm406, %vm407
  %v409 = vsel %vm408, %v401, %v405
  %v410 = vand.u32 2147483647, %v400
  %vm411 = vcmp.eq.f32.partialorder %v410, 8.507059e+37
  %v412 = vand.u32 %v400, 2147483648
  %v413 = vor.u32 1.1754944e-38, %v412
  %v414 = vsel %vm411, %v413, %v409
  %v415 = vmul.f32 1.0, %v414
  %v416 = vtanh.pop %v396
  %v417 = vmul.f32 %v415, %v361
  %419 = vrot.lane.b32.xlu0 %v416, 32
  %v420 = vpop.permute.xlu0 %419
  %v422 = vmul.f32 %v415, %v420
  %424 = vrot.lane.b32.xlu0 %v422, 32
  %v425 = vpop.permute.xlu0 %424
  %v427 = vadd.f32 %v417, %v425
  %v428 = vtanh.pop %v427
  %430 = vrot.lane.b32.xlu0 %v428, 32
  %v431 = vpop.permute.xlu0 %430
  %v433 = vmul.f32 %v415, %v431
  %v434 = vmax.f32 %v368, %v433
  %s435 = scalar_lea.vmem [#allocation2], 32
  %v436 = vld [vmem:[%s435] sm:$0xff]
  %438 = vrot.lane.b32.xlu0 %v433, 64
  %v439 = vpop.permute.xlu0 %438
  %v440 = vsel %vm41, %v439, 0
  %442 = vmatpush.msra.mxu0 0.0
  %443 = vmatpush.msra.mxu0 0.0
  %444 = vmatpush.msra.mxu0 0.0
  %445 = vmatpush.msra.mxu0 0.0
  %446 = vmatpush.msra.mxu0 0.0
  %447 = vmatpush.msra.mxu0 0.0
  %448 = vmatpush.msra.mxu0 0.0
  %449 = vmatpush.msra.mxu0 0.0
  %450 = vmatpush.msra.mxu0 0.0
  %451 = vmatpush.msra.mxu0 0.0
  %452 = vmatpush.msra.mxu0 0.0
  %453 = vmatpush.msra.mxu0 0.0
  %454 = vmatpush.msra.mxu0 %v174
  %455 = vmatpush.msra.mxu0 %v173
  %456 = vmatpush.msra.mxu0 %v172
  %457 = vmatpush.msra.mxu0 %v171
  %458 = vmatmul.f32.gmra.mxu0 %v440
  %v459 = vpop.f32.mrf.mxu0
  %v460 = vadd.f32 0.0, %v459
  %461 = vdwg.mxu0
  %v462 = vadd.f32 %v436, %v460
  %v463 = vxor.u32 %v462, 2147483648
  %v464 = vmul.f32 %v463, 1.442695
  %v465 = vpow.pop %v464
  %v466 = vadd.f32 %v465, 1.0
  %v467 = vrcp.pop %v466
  %v468 = vmul.f32 %v466, %v467
  %v469 = vsub.f32 1.0, %v468
  %v470 = vmul.f32 %v467, %v469
  %v471 = vadd.f32 %v467, %v470
  %vm472 = vweird.f32 %v466
  %vm473 = vweird.f32 %v467
  %vm474 = vmor %vm472, %vm473
  %v475 = vsel %vm474, %v467, %v471
  %v476 = vand.u32 2147483647, %v466
  %vm477 = vcmp.eq.f32.partialorder %v476, 8.507059e+37
  %v478 = vand.u32 %v466, 2147483648
  %v479 = vor.u32 1.1754944e-38, %v478
  %v480 = vsel %vm477, %v479, %v475
  %v481 = vmul.f32 1.0, %v480
  %v482 = vtanh.pop %v462
  %v483 = vmul.f32 %v481, %v427
  %485 = vrot.lane.b32.xlu0 %v482, 32
  %v486 = vpop.permute.xlu0 %485
  %v488 = vmul.f32 %v481, %v486
  %490 = vrot.lane.b32.xlu0 %v488, 32
  %v491 = vpop.permute.xlu0 %490
  %v493 = vadd.f32 %v483, %v491
  %v494 = vtanh.pop %v493
  %496 = vrot.lane.b32.xlu0 %v494, 32
  %v497 = vpop.permute.xlu0 %496
  %v499 = vmul.f32 %v481, %v497
  %v500 = vmax.f32 %v434, %v499
  %s501 = scalar_lea.vmem [#allocation2], 40
  %v502 = vld [vmem:[%s501] sm:$0xff]
  %504 = vrot.lane.b32.xlu0 %v499, 64
  %v505 = vpop.permute.xlu0 %504
  %v506 = vsel %vm41, %v505, 0
  %508 = vmatpush.msra.mxu0 0.0
  %509 = vmatpush.msra.mxu0 0.0
  %510 = vmatpush.msra.mxu0 0.0
  %511 = vmatpush.msra.mxu0 0.0
  %512 = vmatpush.msra.mxu0 0.0
  %513 = vmatpush.msra.mxu0 0.0
  %514 = vmatpush.msra.mxu0 0.0
  %515 = vmatpush.msra.mxu0 0.0
  %516 = vmatpush.msra.mxu0 0.0
  %517 = vmatpush.msra.mxu0 0.0
  %518 = vmatpush.msra.mxu0 0.0
  %519 = vmatpush.msra.mxu0 0.0
  %520 = vmatpush.msra.mxu0 %v174
  %521 = vmatpush.msra.mxu0 %v173
  %522 = vmatpush.msra.mxu0 %v172
  %523 = vmatpush.msra.mxu0 %v171
  %524 = vmatmul.f32.gmra.mxu0 %v506
  %v525 = vpop.f32.mrf.mxu0
  %v526 = vadd.f32 0.0, %v525
  %527 = vdwg.mxu0
  %v528 = vadd.f32 %v502, %v526
  %v529 = vxor.u32 %v528, 2147483648
  %v530 = vmul.f32 %v529, 1.442695
  %v531 = vpow.pop %v530
  %v532 = vadd.f32 %v531, 1.0
  %v533 = vrcp.pop %v532
  %v534 = vmul.f32 %v532, %v533
  %v535 = vsub.f32 1.0, %v534
  %v536 = vmul.f32 %v533, %v535
  %v537 = vadd.f32 %v533, %v536
  %vm538 = vweird.f32 %v532
  %vm539 = vweird.f32 %v533
  %vm540 = vmor %vm538, %vm539
  %v541 = vsel %vm540, %v533, %v537
  %v542 = vand.u32 2147483647, %v532
  %vm543 = vcmp.eq.f32.partialorder %v542, 8.507059e+37
  %v544 = vand.u32 %v532, 2147483648
  %v545 = vor.u32 1.1754944e-38, %v544
  %v546 = vsel %vm543, %v545, %v541
  %v547 = vmul.f32 1.0, %v546
  %v548 = vtanh.pop %v528
  %v549 = vmul.f32 %v547, %v493
  %551 = vrot.lane.b32.xlu0 %v548, 32
  %v552 = vpop.permute.xlu0 %551
  %v554 = vmul.f32 %v547, %v552
  %556 = vrot.lane.b32.xlu0 %v554, 32
  %v557 = vpop.permute.xlu0 %556
  %v559 = vadd.f32 %v549, %v557
  %v560 = vtanh.pop %v559
  %562 = vrot.lane.b32.xlu0 %v560, 32
  %v563 = vpop.permute.xlu0 %562
  %v565 = vmul.f32 %v547, %v563
  %v566 = vmax.f32 %v500, %v565
  %s567 = scalar_lea.vmem [#allocation2], 48
  %v568 = vld [vmem:[%s567] sm:$0xff]
  %570 = vrot.lane.b32.xlu0 %v565, 64
  %v571 = vpop.permute.xlu0 %570
  %v572 = vsel %vm41, %v571, 0
  %574 = vmatpush.msra.mxu0 0.0
  %575 = vmatpush.msra.mxu0 0.0
  %576 = vmatpush.msra.mxu0 0.0
  %577 = vmatpush.msra.mxu0 0.0
  %578 = vmatpush.msra.mxu0 0.0
  %579 = vmatpush.msra.mxu0 0.0
  %580 = vmatpush.msra.mxu0 0.0
  %581 = vmatpush.msra.mxu0 0.0
  %582 = vmatpush.msra.mxu0 0.0
  %583 = vmatpush.msra.mxu0 0.0
  %584 = vmatpush.msra.mxu0 0.0
  %585 = vmatpush.msra.mxu0 0.0
  %586 = vmatpush.msra.mxu0 %v174
  %587 = vmatpush.msra.mxu0 %v173
  %588 = vmatpush.msra.mxu0 %v172
  %589 = vmatpush.msra.mxu0 %v171
  %590 = vmatmul.f32.gmra.mxu0 %v572
  %v591 = vpop.f32.mrf.mxu0
  %v592 = vadd.f32 0.0, %v591
  %593 = vdwg.mxu0
  %v594 = vadd.f32 %v568, %v592
  %v595 = vxor.u32 %v594, 2147483648
  %v596 = vmul.f32 %v595, 1.442695
  %v597 = vpow.pop %v596
  %v598 = vadd.f32 %v597, 1.0
  %v599 = vrcp.pop %v598
  %v600 = vmul.f32 %v598, %v599
  %v601 = vsub.f32 1.0, %v600
  %v602 = vmul.f32 %v599, %v601
  %v603 = vadd.f32 %v599, %v602
  %vm604 = vweird.f32 %v598
  %vm605 = vweird.f32 %v599
  %vm606 = vmor %vm604, %vm605
  %v607 = vsel %vm606, %v599, %v603
  %v608 = vand.u32 2147483647, %v598
  %vm609 = vcmp.eq.f32.partialorder %v608, 8.507059e+37
  %v610 = vand.u32 %v598, 2147483648
  %v611 = vor.u32 1.1754944e-38, %v610
  %v612 = vsel %vm609, %v611, %v607
  %v613 = vmul.f32 1.0, %v612
  %v614 = vtanh.pop %v594
  %v615 = vmul.f32 %v613, %v559
  %617 = vrot.lane.b32.xlu0 %v614, 32
  %v618 = vpop.permute.xlu0 %617
  %v620 = vmul.f32 %v613, %v618
  %622 = vrot.lane.b32.xlu0 %v620, 32
  %v623 = vpop.permute.xlu0 %622
  %v625 = vadd.f32 %v615, %v623
  %v626 = vtanh.pop %v625
  %628 = vrot.lane.b32.xlu0 %v626, 32
  %v629 = vpop.permute.xlu0 %628
  %v631 = vmul.f32 %v613, %v629
  %v632 = vmax.f32 %v566, %v631
  %s633 = scalar_lea.vmem [#allocation2], 56
  %v634 = vld [vmem:[%s633] sm:$0xff]
  %636 = vrot.lane.b32.xlu0 %v631, 64
  %v637 = vpop.permute.xlu0 %636
  %v638 = vsel %vm41, %v637, 0
  %640 = vmatpush.msra.mxu0 0.0
  %641 = vmatpush.msra.mxu0 0.0
  %642 = vmatpush.msra.mxu0 0.0
  %643 = vmatpush.msra.mxu0 0.0
  %644 = vmatpush.msra.mxu0 0.0
  %645 = vmatpush.msra.mxu0 0.0
  %646 = vmatpush.msra.mxu0 0.0
  %647 = vmatpush.msra.mxu0 0.0
  %648 = vmatpush.msra.mxu0 0.0
  %649 = vmatpush.msra.mxu0 0.0
  %650 = vmatpush.msra.mxu0 0.0
  %651 = vmatpush.msra.mxu0 0.0
  %652 = vmatpush.msra.mxu0 %v174
  %653 = vmatpush.msra.mxu0 %v173
  %654 = vmatpush.msra.mxu0 %v172
  %655 = vmatpush.msra.mxu0 %v171
  %656 = vmatmul.f32.gmra.mxu0 %v638
  %v657 = vpop.f32.mrf.mxu0
  %v658 = vadd.f32 0.0, %v657
  %659 = vdwg.mxu0
  %v660 = vadd.f32 %v634, %v658
  %v661 = vxor.u32 %v660, 2147483648
  %v662 = vmul.f32 %v661, 1.442695
  %v663 = vpow.pop %v662
  %v664 = vadd.f32 %v663, 1.0
  %v665 = vrcp.pop %v664
  %v666 = vmul.f32 %v664, %v665
  %v667 = vsub.f32 1.0, %v666
  %v668 = vmul.f32 %v665, %v667
  %v669 = vadd.f32 %v665, %v668
  %vm670 = vweird.f32 %v664
  %vm671 = vweird.f32 %v665
  %vm672 = vmor %vm670, %vm671
  %v673 = vsel %vm672, %v665, %v669
  %v674 = vand.u32 2147483647, %v664
  %vm675 = vcmp.eq.f32.partialorder %v674, 8.507059e+37
  %v676 = vand.u32 %v664, 2147483648
  %v677 = vor.u32 1.1754944e-38, %v676
  %v678 = vsel %vm675, %v677, %v673
  %v679 = vmul.f32 1.0, %v678
  %v680 = vtanh.pop %v660
  %v681 = vmul.f32 %v679, %v625
  %683 = vrot.lane.b32.xlu0 %v680, 32
  %v684 = vpop.permute.xlu0 %683
  %v686 = vmul.f32 %v679, %v684
  %688 = vrot.lane.b32.xlu0 %v686, 32
  %v689 = vpop.permute.xlu0 %688
  %v691 = vadd.f32 %v681, %v689
  %v692 = vtanh.pop %v691
  %694 = vrot.lane.b32.xlu0 %v692, 32
  %v695 = vpop.permute.xlu0 %694
  %v697 = vmul.f32 %v679, %v695
  %v698 = vmax.f32 %v632, %v697
  %s699 = scalar_lea.vmem [#allocation2], 64
  %v700 = vld [vmem:[%s699] sm:$0xff]
  %702 = vrot.lane.b32.xlu0 %v697, 64
  %v703 = vpop.permute.xlu0 %702
  %v704 = vsel %vm41, %v703, 0
  %706 = vmatpush.msra.mxu0 0.0
  %707 = vmatpush.msra.mxu0 0.0
  %708 = vmatpush.msra.mxu0 0.0
  %709 = vmatpush.msra.mxu0 0.0
  %710 = vmatpush.msra.mxu0 0.0
  %711 = vmatpush.msra.mxu0 0.0
  %712 = vmatpush.msra.mxu0 0.0
  %713 = vmatpush.msra.mxu0 0.0
  %714 = vmatpush.msra.mxu0 0.0
  %715 = vmatpush.msra.mxu0 0.0
  %716 = vmatpush.msra.mxu0 0.0
  %717 = vmatpush.msra.mxu0 0.0
  %718 = vmatpush.msra.mxu0 %v174
  %719 = vmatpush.msra.mxu0 %v173
  %720 = vmatpush.msra.mxu0 %v172
  %721 = vmatpush.msra.mxu0 %v171
  %722 = vmatmul.f32.gmra.mxu0 %v704
  %v723 = vpop.f32.mrf.mxu0
  %v724 = vadd.f32 0.0, %v723
  %725 = vdwg.mxu0
  %v726 = vadd.f32 %v700, %v724
  %v727 = vxor.u32 %v726, 2147483648
  %v728 = vmul.f32 %v727, 1.442695
  %v729 = vpow.pop %v728
  %v730 = vadd.f32 %v729, 1.0
  %v731 = vrcp.pop %v730
  %v732 = vmul.f32 %v730, %v731
  %v733 = vsub.f32 1.0, %v732
  %v734 = vmul.f32 %v731, %v733
  %v735 = vadd.f32 %v731, %v734
  %vm736 = vweird.f32 %v730
  %vm737 = vweird.f32 %v731
  %vm738 = vmor %vm736, %vm737
  %v739 = vsel %vm738, %v731, %v735
  %v740 = vand.u32 2147483647, %v730
  %vm741 = vcmp.eq.f32.partialorder %v740, 8.507059e+37
  %v742 = vand.u32 %v730, 2147483648
  %v743 = vor.u32 1.1754944e-38, %v742
  %v744 = vsel %vm741, %v743, %v739
  %v745 = vmul.f32 1.0, %v744
  %v746 = vtanh.pop %v726
  %v747 = vmul.f32 %v745, %v691
  %749 = vrot.lane.b32.xlu0 %v746, 32
  %v750 = vpop.permute.xlu0 %749
  %v752 = vmul.f32 %v745, %v750
  %754 = vrot.lane.b32.xlu0 %v752, 32
  %v755 = vpop.permute.xlu0 %754
  %v757 = vadd.f32 %v747, %v755
  %v758 = vtanh.pop %v757
  %760 = vrot.lane.b32.xlu0 %v758, 32
  %v761 = vpop.permute.xlu0 %760
  %v763 = vmul.f32 %v745, %v761
  %v764 = vmax.f32 %v698, %v763
  %s765 = scalar_lea.vmem [#allocation2], 72
  %v766 = vld [vmem:[%s765] sm:$0xff]
  %768 = vrot.lane.b32.xlu0 %v763, 64
  %v769 = vpop.permute.xlu0 %768
  %v770 = vsel %vm41, %v769, 0
  %772 = vmatpush.msra.mxu0 0.0
  %773 = vmatpush.msra.mxu0 0.0
  %774 = vmatpush.msra.mxu0 0.0
  %775 = vmatpush.msra.mxu0 0.0
  %776 = vmatpush.msra.mxu0 0.0
  %777 = vmatpush.msra.mxu0 0.0
  %778 = vmatpush.msra.mxu0 0.0
  %779 = vmatpush.msra.mxu0 0.0
  %780 = vmatpush.msra.mxu0 0.0
  %781 = vmatpush.msra.mxu0 0.0
  %782 = vmatpush.msra.mxu0 0.0
  %783 = vmatpush.msra.mxu0 0.0
  %784 = vmatpush.msra.mxu0 %v174
  %785 = vmatpush.msra.mxu0 %v173
  %786 = vmatpush.msra.mxu0 %v172
  %787 = vmatpush.msra.mxu0 %v171
  %788 = vmatmul.f32.gmra.mxu0 %v770
  %v789 = vpop.f32.mrf.mxu0
  %v790 = vadd.f32 0.0, %v789
  %791 = vdwg.mxu0
  %v792 = vadd.f32 %v766, %v790
  %v793 = vxor.u32 %v792, 2147483648
  %v794 = vmul.f32 %v793, 1.442695
  %v795 = vpow.pop %v794
  %v796 = vadd.f32 %v795, 1.0
  %v797 = vrcp.pop %v796
  %v798 = vmul.f32 %v796, %v797
  %v799 = vsub.f32 1.0, %v798
  %v800 = vmul.f32 %v797, %v799
  %v801 = vadd.f32 %v797, %v800
  %vm802 = vweird.f32 %v796
  %vm803 = vweird.f32 %v797
  %vm804 = vmor %vm802, %vm803
  %v805 = vsel %vm804, %v797, %v801
  %v806 = vand.u32 2147483647, %v796
  %vm807 = vcmp.eq.f32.partialorder %v806, 8.507059e+37
  %v808 = vand.u32 %v796, 2147483648
  %v809 = vor.u32 1.1754944e-38, %v808
  %v810 = vsel %vm807, %v809, %v805
  %v811 = vmul.f32 1.0, %v810
  %v812 = vtanh.pop %v792
  %v813 = vmul.f32 %v811, %v757
  %815 = vrot.lane.b32.xlu0 %v812, 32
  %v816 = vpop.permute.xlu0 %815
  %v818 = vmul.f32 %v811, %v816
  %820 = vrot.lane.b32.xlu0 %v818, 32
  %v821 = vpop.permute.xlu0 %820
  %v823 = vadd.f32 %v813, %v821
  %v824 = vtanh.pop %v823
  %826 = vrot.lane.b32.xlu0 %v824, 32
  %v827 = vpop.permute.xlu0 %826
  %v829 = vmul.f32 %v811, %v827
  %v830 = vmax.f32 %v764, %v829
  %s831 = scalar_lea.vmem [#allocation2], 80
  %v832 = vld [vmem:[%s831] sm:$0xff]
  %834 = vrot.lane.b32.xlu0 %v829, 64
  %v835 = vpop.permute.xlu0 %834
  %v836 = vsel %vm41, %v835, 0
  %838 = vmatpush.msra.mxu0 0.0
  %839 = vmatpush.msra.mxu0 0.0
  %840 = vmatpush.msra.mxu0 0.0
  %841 = vmatpush.msra.mxu0 0.0
  %842 = vmatpush.msra.mxu0 0.0
  %843 = vmatpush.msra.mxu0 0.0
  %844 = vmatpush.msra.mxu0 0.0
  %845 = vmatpush.msra.mxu0 0.0
  %846 = vmatpush.msra.mxu0 0.0
  %847 = vmatpush.msra.mxu0 0.0
  %848 = vmatpush.msra.mxu0 0.0
  %849 = vmatpush.msra.mxu0 0.0
  %850 = vmatpush.msra.mxu0 %v174
  %851 = vmatpush.msra.mxu0 %v173
  %852 = vmatpush.msra.mxu0 %v172
  %853 = vmatpush.msra.mxu0 %v171
  %854 = vmatmul.f32.gmra.mxu0 %v836
  %v855 = vpop.f32.mrf.mxu0
  %v856 = vadd.f32 0.0, %v855
  %857 = vdwg.mxu0
  %v858 = vadd.f32 %v832, %v856
  %v859 = vxor.u32 %v858, 2147483648
  %v860 = vmul.f32 %v859, 1.442695
  %v861 = vpow.pop %v860
  %v862 = vadd.f32 %v861, 1.0
  %v863 = vrcp.pop %v862
  %v864 = vmul.f32 %v862, %v863
  %v865 = vsub.f32 1.0, %v864
  %v866 = vmul.f32 %v863, %v865
  %v867 = vadd.f32 %v863, %v866
  %vm868 = vweird.f32 %v862
  %vm869 = vweird.f32 %v863
  %vm870 = vmor %vm868, %vm869
  %v871 = vsel %vm870, %v863, %v867
  %v872 = vand.u32 2147483647, %v862
  %vm873 = vcmp.eq.f32.partialorder %v872, 8.507059e+37
  %v874 = vand.u32 %v862, 2147483648
  %v875 = vor.u32 1.1754944e-38, %v874
  %v876 = vsel %vm873, %v875, %v871
  %v877 = vmul.f32 1.0, %v876
  %v878 = vtanh.pop %v858
  %v879 = vmul.f32 %v877, %v823
  %881 = vrot.lane.b32.xlu0 %v878, 32
  %v882 = vpop.permute.xlu0 %881
  %v884 = vmul.f32 %v877, %v882
  %886 = vrot.lane.b32.xlu0 %v884, 32
  %v887 = vpop.permute.xlu0 %886
  %v889 = vadd.f32 %v879, %v887
  %v890 = vtanh.pop %v889
  %892 = vrot.lane.b32.xlu0 %v890, 32
  %v893 = vpop.permute.xlu0 %892
  %v895 = vmul.f32 %v877, %v893
  %v896 = vmax.f32 %v830, %v895
  %s897 = scalar_lea.vmem [#allocation2], 88
  %v898 = vld [vmem:[%s897] sm:$0xff]
  %900 = vrot.lane.b32.xlu0 %v895, 64
  %v901 = vpop.permute.xlu0 %900
  %v902 = vsel %vm41, %v901, 0
  %904 = vmatpush.msra.mxu0 0.0
  %905 = vmatpush.msra.mxu0 0.0
  %906 = vmatpush.msra.mxu0 0.0
  %907 = vmatpush.msra.mxu0 0.0
  %908 = vmatpush.msra.mxu0 0.0
  %909 = vmatpush.msra.mxu0 0.0
  %910 = vmatpush.msra.mxu0 0.0
  %911 = vmatpush.msra.mxu0 0.0
  %912 = vmatpush.msra.mxu0 0.0
  %913 = vmatpush.msra.mxu0 0.0
  %914 = vmatpush.msra.mxu0 0.0
  %915 = vmatpush.msra.mxu0 0.0
  %916 = vmatpush.msra.mxu0 %v174
  %917 = vmatpush.msra.mxu0 %v173
  %918 = vmatpush.msra.mxu0 %v172
  %919 = vmatpush.msra.mxu0 %v171
  %920 = vmatmul.f32.gmra.mxu0 %v902
  %v921 = vpop.f32.mrf.mxu0
  %v922 = vadd.f32 0.0, %v921
  %923 = vdwg.mxu0
  %v924 = vadd.f32 %v898, %v922
  %v925 = vxor.u32 %v924, 2147483648
  %v926 = vmul.f32 %v925, 1.442695
  %v927 = vpow.pop %v926
  %v928 = vadd.f32 %v927, 1.0
  %v929 = vrcp.pop %v928
  %v930 = vmul.f32 %v928, %v929
  %v931 = vsub.f32 1.0, %v930
  %v932 = vmul.f32 %v929, %v931
  %v933 = vadd.f32 %v929, %v932
  %vm934 = vweird.f32 %v928
  %vm935 = vweird.f32 %v929
  %vm936 = vmor %vm934, %vm935
  %v937 = vsel %vm936, %v929, %v933
  %v938 = vand.u32 2147483647, %v928
  %vm939 = vcmp.eq.f32.partialorder %v938, 8.507059e+37
  %v940 = vand.u32 %v928, 2147483648
  %v941 = vor.u32 1.1754944e-38, %v940
  %v942 = vsel %vm939, %v941, %v937
  %v943 = vmul.f32 1.0, %v942
  %v944 = vtanh.pop %v924
  %v945 = vmul.f32 %v943, %v889
  %947 = vrot.lane.b32.xlu0 %v944, 32
  %v948 = vpop.permute.xlu0 %947
  %v950 = vmul.f32 %v943, %v948
  %952 = vrot.lane.b32.xlu0 %v950, 32
  %v953 = vpop.permute.xlu0 %952
  %v955 = vadd.f32 %v945, %v953
  %v956 = vtanh.pop %v955
  %958 = vrot.lane.b32.xlu0 %v956, 32
  %v959 = vpop.permute.xlu0 %958
  %v961 = vmul.f32 %v943, %v959
  %v962 = vmax.f32 %v896, %v961
  %s963 = scalar_lea.vmem [#allocation2], 96
  %v964 = vld [vmem:[%s963] sm:$0xff]
  %966 = vrot.lane.b32.xlu0 %v961, 64
  %v967 = vpop.permute.xlu0 %966
  %v968 = vsel %vm41, %v967, 0
  %970 = vmatpush.msra.mxu0 0.0
  %971 = vmatpush.msra.mxu0 0.0
  %972 = vmatpush.msra.mxu0 0.0
  %973 = vmatpush.msra.mxu0 0.0
  %974 = vmatpush.msra.mxu0 0.0
  %975 = vmatpush.msra.mxu0 0.0
  %976 = vmatpush.msra.mxu0 0.0
  %977 = vmatpush.msra.mxu0 0.0
  %978 = vmatpush.msra.mxu0 0.0
  %979 = vmatpush.msra.mxu0 0.0
  %980 = vmatpush.msra.mxu0 0.0
  %981 = vmatpush.msra.mxu0 0.0
  %982 = vmatpush.msra.mxu0 %v174
  %983 = vmatpush.msra.mxu0 %v173
  %984 = vmatpush.msra.mxu0 %v172
  %985 = vmatpush.msra.mxu0 %v171
  %986 = vmatmul.f32.gmra.mxu0 %v968
  %v987 = vpop.f32.mrf.mxu0
  %v988 = vadd.f32 0.0, %v987
  %989 = vdwg.mxu0
  %v990 = vadd.f32 %v964, %v988
  %v991 = vxor.u32 %v990, 2147483648
  %v992 = vmul.f32 %v991, 1.442695
  %v993 = vpow.pop %v992
  %v994 = vadd.f32 %v993, 1.0
  %v995 = vrcp.pop %v994
  %v996 = vmul.f32 %v994, %v995
  %v997 = vsub.f32 1.0, %v996
  %v998 = vmul.f32 %v995, %v997
  %v999 = vadd.f32 %v995, %v998
  %vm1000 = vweird.f32 %v994
  %vm1001 = vweird.f32 %v995
  %vm1002 = vmor %vm1000, %vm1001
  %v1003 = vsel %vm1002, %v995, %v999
  %v1004 = vand.u32 2147483647, %v994
  %vm1005 = vcmp.eq.f32.partialorder %v1004, 8.507059e+37
  %v1006 = vand.u32 %v994, 2147483648
  %v1007 = vor.u32 1.1754944e-38, %v1006
  %v1008 = vsel %vm1005, %v1007, %v1003
  %v1009 = vmul.f32 1.0, %v1008
  %v1010 = vtanh.pop %v990
  %v1011 = vmul.f32 %v1009, %v955
  %1013 = vrot.lane.b32.xlu0 %v1010, 32
  %v1014 = vpop.permute.xlu0 %1013
  %v1016 = vmul.f32 %v1009, %v1014
  %1018 = vrot.lane.b32.xlu0 %v1016, 32
  %v1019 = vpop.permute.xlu0 %1018
  %v1021 = vadd.f32 %v1011, %v1019
  %v1022 = vtanh.pop %v1021
  %1024 = vrot.lane.b32.xlu0 %v1022, 32
  %v1025 = vpop.permute.xlu0 %1024
  %v1027 = vmul.f32 %v1009, %v1025
  %v1028 = vmax.f32 %v962, %v1027
  %s1029 = scalar_lea.vmem [#allocation2], 104
  %v1030 = vld [vmem:[%s1029] sm:$0xff]
  %1032 = vrot.lane.b32.xlu0 %v1027, 64
  %v1033 = vpop.permute.xlu0 %1032
  %v1034 = vsel %vm41, %v1033, 0
  %1036 = vmatpush.msra.mxu0 0.0
  %1037 = vmatpush.msra.mxu0 0.0
  %1038 = vmatpush.msra.mxu0 0.0
  %1039 = vmatpush.msra.mxu0 0.0
  %1040 = vmatpush.msra.mxu0 0.0
  %1041 = vmatpush.msra.mxu0 0.0
  %1042 = vmatpush.msra.mxu0 0.0
  %1043 = vmatpush.msra.mxu0 0.0
  %1044 = vmatpush.msra.mxu0 0.0
  %1045 = vmatpush.msra.mxu0 0.0
  %1046 = vmatpush.msra.mxu0 0.0
  %1047 = vmatpush.msra.mxu0 0.0
  %1048 = vmatpush.msra.mxu0 %v174
  %1049 = vmatpush.msra.mxu0 %v173
  %1050 = vmatpush.msra.mxu0 %v172
  %1051 = vmatpush.msra.mxu0 %v171
  %1052 = vmatmul.f32.gmra.mxu0 %v1034
  %v1053 = vpop.f32.mrf.mxu0
  %v1054 = vadd.f32 0.0, %v1053
  %1055 = vdwg.mxu0
  %v1056 = vadd.f32 %v1030, %v1054
  %v1057 = vxor.u32 %v1056, 2147483648
  %v1058 = vmul.f32 %v1057, 1.442695
  %v1059 = vpow.pop %v1058
  %v1060 = vadd.f32 %v1059, 1.0
  %v1061 = vrcp.pop %v1060
  %v1062 = vmul.f32 %v1060, %v1061
  %v1063 = vsub.f32 1.0, %v1062
  %v1064 = vmul.f32 %v1061, %v1063
  %v1065 = vadd.f32 %v1061, %v1064
  %vm1066 = vweird.f32 %v1060
  %vm1067 = vweird.f32 %v1061
  %vm1068 = vmor %vm1066, %vm1067
  %v1069 = vsel %vm1068, %v1061, %v1065
  %v1070 = vand.u32 2147483647, %v1060
  %vm1071 = vcmp.eq.f32.partialorder %v1070, 8.507059e+37
  %v1072 = vand.u32 %v1060, 2147483648
  %v1073 = vor.u32 1.1754944e-38, %v1072
  %v1074 = vsel %vm1071, %v1073, %v1069
  %v1075 = vmul.f32 1.0, %v1074
  %v1076 = vtanh.pop %v1056
  %v1077 = vmul.f32 %v1075, %v1021
  %1079 = vrot.lane.b32.xlu0 %v1076, 32
  %v1080 = vpop.permute.xlu0 %1079
  %v1082 = vmul.f32 %v1075, %v1080
  %1084 = vrot.lane.b32.xlu0 %v1082, 32
  %v1085 = vpop.permute.xlu0 %1084
  %v1087 = vadd.f32 %v1077, %v1085
  %v1088 = vtanh.pop %v1087
  %1090 = vrot.lane.b32.xlu0 %v1088, 32
  %v1091 = vpop.permute.xlu0 %1090
  %v1093 = vmul.f32 %v1075, %v1091
  %v1094 = vmax.f32 %v1028, %v1093
  %s1095 = scalar_lea.vmem [#allocation2], 112
  %v1096 = vld [vmem:[%s1095] sm:$0xff]
  %1098 = vrot.lane.b32.xlu0 %v1093, 64
  %v1099 = vpop.permute.xlu0 %1098
  %v1100 = vsel %vm41, %v1099, 0
  %1102 = vmatpush.msra.mxu0 0.0
  %1103 = vmatpush.msra.mxu0 0.0
  %1104 = vmatpush.msra.mxu0 0.0
  %1105 = vmatpush.msra.mxu0 0.0
  %1106 = vmatpush.msra.mxu0 0.0
  %1107 = vmatpush.msra.mxu0 0.0
  %1108 = vmatpush.msra.mxu0 0.0
  %1109 = vmatpush.msra.mxu0 0.0
  %1110 = vmatpush.msra.mxu0 0.0
  %1111 = vmatpush.msra.mxu0 0.0
  %1112 = vmatpush.msra.mxu0 0.0
  %1113 = vmatpush.msra.mxu0 0.0
  %1114 = vmatpush.msra.mxu0 %v174
  %1115 = vmatpush.msra.mxu0 %v173
  %1116 = vmatpush.msra.mxu0 %v172
  %1117 = vmatpush.msra.mxu0 %v171
  %1118 = vmatmul.f32.gmra.mxu0 %v1100
  %v1119 = vpop.f32.mrf.mxu0
  %v1120 = vadd.f32 0.0, %v1119
  %1121 = vdwg.mxu0
  %v1122 = vadd.f32 %v1096, %v1120
  %v1123 = vxor.u32 %v1122, 2147483648
  %v1124 = vmul.f32 %v1123, 1.442695
  %v1125 = vpow.pop %v1124
  %v1126 = vadd.f32 %v1125, 1.0
  %v1127 = vrcp.pop %v1126
  %v1128 = vmul.f32 %v1126, %v1127
  %v1129 = vsub.f32 1.0, %v1128
  %v1130 = vmul.f32 %v1127, %v1129
  %v1131 = vadd.f32 %v1127, %v1130
  %vm1132 = vweird.f32 %v1126
  %vm1133 = vweird.f32 %v1127
  %vm1134 = vmor %vm1132, %vm1133
  %v1135 = vsel %vm1134, %v1127, %v1131
  %v1136 = vand.u32 2147483647, %v1126
  %vm1137 = vcmp.eq.f32.partialorder %v1136, 8.507059e+37
  %v1138 = vand.u32 %v1126, 2147483648
  %v1139 = vor.u32 1.1754944e-38, %v1138
  %v1140 = vsel %vm1137, %v1139, %v1135
  %v1141 = vmul.f32 1.0, %v1140
  %v1142 = vtanh.pop %v1122
  %v1143 = vmul.f32 %v1141, %v1087
  %1145 = vrot.lane.b32.xlu0 %v1142, 32
  %v1146 = vpop.permute.xlu0 %1145
  %v1148 = vmul.f32 %v1141, %v1146
  %1150 = vrot.lane.b32.xlu0 %v1148, 32
  %v1151 = vpop.permute.xlu0 %1150
  %v1153 = vadd.f32 %v1143, %v1151
  %v1154 = vtanh.pop %v1153
  %1156 = vrot.lane.b32.xlu0 %v1154, 32
  %v1157 = vpop.permute.xlu0 %1156
  %v1159 = vmul.f32 %v1141, %v1157
  %v1160 = vmax.f32 %v1094, %v1159
  %s1161 = scalar_lea.vmem [#allocation2], 120
  %v1162 = vld [vmem:[%s1161] sm:$0xff]
  %1164 = vrot.lane.b32.xlu0 %v1159, 64
  %v1165 = vpop.permute.xlu0 %1164
  %v1166 = vsel %vm41, %v1165, 0
  %1168 = vmatpush.msra.mxu0 0.0
  %1169 = vmatpush.msra.mxu0 0.0
  %1170 = vmatpush.msra.mxu0 0.0
  %1171 = vmatpush.msra.mxu0 0.0
  %1172 = vmatpush.msra.mxu0 0.0
  %1173 = vmatpush.msra.mxu0 0.0
  %1174 = vmatpush.msra.mxu0 0.0
  %1175 = vmatpush.msra.mxu0 0.0
  %1176 = vmatpush.msra.mxu0 0.0
  %1177 = vmatpush.msra.mxu0 0.0
  %1178 = vmatpush.msra.mxu0 0.0
  %1179 = vmatpush.msra.mxu0 0.0
  %1180 = vmatpush.msra.mxu0 %v174
  %1181 = vmatpush.msra.mxu0 %v173
  %1182 = vmatpush.msra.mxu0 %v172
  %1183 = vmatpush.msra.mxu0 %v171
  %1184 = vmatmul.f32.gmra.mxu0 %v1166
  %v1185 = vpop.f32.mrf.mxu0
  %v1186 = vadd.f32 0.0, %v1185
  %1187 = vdwg.mxu0
  %v1188 = vadd.f32 %v1162, %v1186
  %v1189 = vxor.u32 %v1188, 2147483648
  %v1190 = vmul.f32 %v1189, 1.442695
  %v1191 = vpow.pop %v1190
  %v1192 = vadd.f32 %v1191, 1.0
  %v1193 = vrcp.pop %v1192
  %v1194 = vmul.f32 %v1192, %v1193
  %v1195 = vsub.f32 1.0, %v1194
  %v1196 = vmul.f32 %v1193, %v1195
  %v1197 = vadd.f32 %v1193, %v1196
  %vm1198 = vweird.f32 %v1192
  %vm1199 = vweird.f32 %v1193
  %vm1200 = vmor %vm1198, %vm1199
  %v1201 = vsel %vm1200, %v1193, %v1197
  %v1202 = vand.u32 2147483647, %v1192
  %vm1203 = vcmp.eq.f32.partialorder %v1202, 8.507059e+37
  %v1204 = vand.u32 %v1192, 2147483648
  %v1205 = vor.u32 1.1754944e-38, %v1204
  %v1206 = vsel %vm1203, %v1205, %v1201
  %v1207 = vmul.f32 1.0, %v1206
  %v1208 = vtanh.pop %v1188
  %v1209 = vmul.f32 %v1207, %v1153
  %1211 = vrot.lane.b32.xlu0 %v1208, 32
  %v1212 = vpop.permute.xlu0 %1211
  %v1214 = vmul.f32 %v1207, %v1212
  %1216 = vrot.lane.b32.xlu0 %v1214, 32
  %v1217 = vpop.permute.xlu0 %1216
  %v1219 = vadd.f32 %v1209, %v1217
  %v1220 = vtanh.pop %v1219
  %1222 = vrot.lane.b32.xlu0 %v1220, 32
  %v1223 = vpop.permute.xlu0 %1222
  %v1225 = vmul.f32 %v1207, %v1223
  %v1226 = vmax.f32 %v1160, %v1225
  %1228 = vrot.lane.b32.xlu0 %v1226, 64
  %v1229 = vpop.permute.xlu0 %1228
  %1231 = vst.msk [vmem:[%s4] sm:$0xff] %vm41, %v1229
  // Predicated region
  $region18: #{discriminator_forward.1} parent=0 // pred_check
    _
  $region19: #{discriminator_forward.1} parent=0 // pred_check_branch
    %1233 = sbr.rel (0) target = $region21
  $region20: #{discriminator_forward.1} parent=0 // pred_region
    _
  $region21: #{discriminator_forward.1} parent=0 // pred_fallthru
    _
  // Predicated region
  $region22: #{discriminator_forward.1} parent=0 // pred_check
    _
  $region23: #{discriminator_forward.1} parent=0 // pred_check_branch
    %1235 = sbr.rel (0) target = $region25
  $region24: #{discriminator_forward.1} parent=0 // pred_region
    _
  $region25: #{discriminator_forward.1} parent=0 // pred_fallthru
    _

</llo_original>
